<compile_context>
chip_gen: v7x
topology: tpu7x:2x2x1
jax: 0.10.0
libtpu: 0.0.40
codegen_flags: <defaults>
</compile_context>

<pallas_src>
import functools

import jax
import jax.numpy as jnp
from jax.experimental import pallas as pl
from jax.experimental.pallas import tpu as pltpu


def _round_up(x, m):
    return ((x + m - 1) // m) * m


def _cdiv(a, m):
    return -(-a // m)


def _mlp_deep_kernel(num_blocks, x_ref, w1_ref, b1_ref, *rest):
    """Whole forward pass on one (TILE_B, D_in) activation tile.

    Refs:
      x_ref  (TILE_B, D_in)        compute dtype (bf16/f32)
      w1_ref (D_in, H) cdtype,  b1_ref (1, H) f32
      [wb_ref (num_blocks, H, H) cdtype,  pb_ref (num_blocks, 3, H) f32]
      wo_ref (H, C_pad) cdtype, bo_ref (1, C_pad) f32
      out_ref (TILE_B, C_pad) f32
    """
    if num_blocks > 0:
        wb_ref, pb_ref, wo_ref, bo_ref, out_ref = rest
    else:
        wo_ref, bo_ref, out_ref = rest

    # First Linear + ReLU (bf16 operands, f32 MXU accumulation).
    h = jnp.dot(x_ref[...], w1_ref[...], preferred_element_type=jnp.float32)
    h = jnp.maximum(h + b1_ref[...], 0.0)

    # Blocks: Linear -> LayerNorm(eps=1e-5, biased var) -> ReLU, LN math f32.
    for blk in range(num_blocks):
        w = wb_ref[blk]                       # (H, H) compute dtype
        pb = pb_ref[blk]                      # (3, H) f32: bias, gamma, beta
        bias = pb[0:1, :]
        gamma = pb[1:2, :]
        beta = pb[2:3, :]

        y = jnp.dot(h.astype(w.dtype), w, preferred_element_type=jnp.float32)
        y = y + bias

        # Two independent row reductions (pipeline in the XLU), f32.
        inv_n = 1.0 / y.shape[-1]
        s1 = jnp.sum(y, axis=-1, keepdims=True)
        s2 = jnp.sum(y * y, axis=-1, keepdims=True)
        mu = s1 * inv_n
        var = s2 * inv_n - mu * mu            # biased variance (torch LN)
        scale = gamma * jax.lax.rsqrt(var + 1e-5)   # rsqrt -> EUP slot
        h = jnp.maximum((y - mu) * scale + beta, 0.0)

    # Final Linear (logits), lane-dense padded output columns.
    out = jnp.dot(h.astype(wo_ref.dtype), wo_ref[...],
                  preferred_element_type=jnp.float32)
    out_ref[...] = out + bo_ref[...]


def init_params(key, h, w, num_classes, num_layers, hidden_dim, dtype=jnp.float32):
    """Deterministic synthetic parameter init (shapes match the torch module)."""
    d_in = 3 * h * w
    params = []

    def linear(key, fan_in, fan_out):
        kw, kb = jax.random.split(key)
        bound = 1.0 / jnp.sqrt(fan_in)
        # stored pre-transposed: (in, out)
        wgt = jax.random.uniform(kw, (fan_in, fan_out), dtype, -bound, bound)
        bias = jax.random.uniform(kb, (1, fan_out), dtype, -bound, bound)
        return wgt, bias

    keys = jax.random.split(key, num_layers + 1)
    w1, b1 = linear(keys[0], d_in, hidden_dim)
    params += [w1, b1]
    for i in range(num_layers - 1):
        wi, bi = linear(keys[1 + i], hidden_dim, hidden_dim)
        gamma = jnp.ones((1, hidden_dim), dtype)   # LayerNorm default init
        beta = jnp.zeros((1, hidden_dim), dtype)
        params += [wi, bi, gamma, beta]
    wo, bo = linear(keys[num_layers], hidden_dim, num_classes)
    params += [wo, bo]
    return params


def _const_spec(shape):
    nd = len(shape)
    return pl.BlockSpec(shape, lambda i, _nd=nd: (0,) * _nd)


def mlp_classifier_deep(x_nchw, params, *, num_layers, num_classes,
                        tile_b=512, compute_dtype=jnp.bfloat16):
    """Flatten + pad + one batch-tiled pallas_call that runs the whole MLP."""
    b = x_nchw.shape[0]
    # Cast to the compute dtype BEFORE padding (narrower wrapper-side copy).
    x_flat = x_nchw.reshape(b, -1).astype(compute_dtype)   # torch.nn.Flatten (NCHW)
    d_in = x_flat.shape[1]
    num_blocks = num_layers - 1
    hidden = params[0].shape[1]

    # --- batch tiling: multiple of 16 for bf16 (8 for f32); tiny batches run
    #     as a single grid step; large batches use big (default 512) tiles.
    align = 16 if jnp.dtype(compute_dtype).itemsize < 4 else 8
    tile_b = min(tile_b, _round_up(b, align))
    tile_b = _round_up(max(tile_b, align), align)
    steps = _cdiv(b, tile_b)
    if steps > 1 and steps % 2 == 1:
        # Prefer an even parallel step count so v7x's two TCs split evenly.
        tile_b = _round_up(_cdiv(b, steps + 1), align)
        steps = _cdiv(b, tile_b)
    b_pad = steps * tile_b
    x_pad = jnp.pad(x_flat, ((0, b_pad - b), (0, 0)))

    # --- lane-dense logits: pad the head from num_classes -> multiple of 128.
    c_pad = max(128, _round_up(num_classes, 128))

    # --- assemble kernel-side params: matmul weights in compute dtype,
    #     biases / LayerNorm params in f32; block params stacked into two
    #     tensors to minimize the number of input refs / DMA descriptors.
    w1 = params[0].astype(compute_dtype)
    b1 = params[1].astype(jnp.float32).reshape(1, hidden)
    kparams = [w1, b1]
    if num_blocks > 0:
        wb = jnp.stack([params[2 + 4 * i].astype(compute_dtype)
                        for i in range(num_blocks)])                 # (nb, H, H)
        pb = jnp.stack([
            jnp.concatenate(
                [params[2 + 4 * i + 1].reshape(1, hidden),   # bias
                 params[2 + 4 * i + 2].reshape(1, hidden),   # gamma
                 params[2 + 4 * i + 3].reshape(1, hidden)],  # beta
                axis=0)
            for i in range(num_blocks)]).astype(jnp.float32)         # (nb, 3, H)
        kparams += [wb, pb]
    wo = params[2 + 4 * num_blocks]
    bo = params[3 + 4 * num_blocks]
    wo_p = jnp.zeros((hidden, c_pad), compute_dtype).at[:, :num_classes].set(
        wo.astype(compute_dtype))
    bo_p = jnp.zeros((1, c_pad), jnp.float32).at[:, :num_classes].set(
        bo.astype(jnp.float32).reshape(1, -1))
    kparams += [wo_p, bo_p]

    inputs = (x_pad, *kparams)

    # --- specs: x/out tiled over batch, all parameters grid-invariant.
    in_specs = [pl.BlockSpec((tile_b, d_in), lambda i: (i, 0))]
    in_specs += [_const_spec(p.shape) for p in kparams]
    out_spec = pl.BlockSpec((tile_b, c_pad), lambda i: (i, 0))

    grid = (steps,)

    # --- VMEM budget: invariant params counted once (no double buffer),
    #     activation tiles double-buffered; cap at 48 MiB (v7x headroom).
    cbytes = jnp.dtype(compute_dtype).itemsize
    param_bytes = sum(int(p.size) * p.dtype.itemsize for p in kparams)
    act_bytes = tile_b * d_in * cbytes + tile_b * c_pad * 4
    needed = param_bytes + 2 * act_bytes + (8 << 20)   # + compiler slack
    vmem_limit = int(min(48 << 20, max(32 << 20, needed)))

    cost = pl.CostEstimate(
        flops=2 * b_pad * (d_in * hidden + num_blocks * hidden * hidden
                           + hidden * c_pad),
        transcendentals=b_pad * num_blocks,  # one rsqrt per row per block
        bytes_accessed=int(x_pad.size * cbytes + param_bytes + b_pad * c_pad * 4),
    )

    kernel = functools.partial(_mlp_deep_kernel, num_blocks)
    out = pl.pallas_call(
        kernel,
        grid=grid,
        in_specs=in_specs,
        out_specs=out_spec,
        out_shape=jax.ShapeDtypeStruct((b_pad, c_pad), jnp.float32),
        compiler_params=pltpu.CompilerParams(
            dimension_semantics=("parallel",),   # 2 TCs on v7x split the batch
            vmem_limit_bytes=vmem_limit),
        cost_estimate=cost,
    )(*inputs)

    # Strip batch + class padding.
    return out[:b, :num_classes]


if __name__ == "__main__":
    # Small shapes consistent with the module's forward (NCHW, 3 channels).
    B, C_IN, H, W = 20, 3, 16, 16
    NUM_CLASSES = 6
    NUM_LAYERS = 4
    HIDDEN_DIM = 128
    COMPUTE_DTYPE = jnp.bfloat16    # bf16 matmuls, f32 accumulation + LN math

    key = jax.random.PRNGKey(0)
    kx, kp = jax.random.split(key)
    x = jax.random.normal(kx, (B, C_IN, H, W), jnp.float32)
    params = init_params(kp, H, W, NUM_CLASSES, NUM_LAYERS, HIDDEN_DIM)

    # Default tile_b -> single grid step for this tiny batch (tile_b = 32).
    logits = mlp_classifier_deep(
        x, params, num_layers=NUM_LAYERS, num_classes=NUM_CLASSES,
        compute_dtype=COMPUTE_DTYPE)
    jax.block_until_ready(logits)

    # Pure-JAX reference with identical precision policy (bf16 matmul operands,
    # f32 accumulation, f32 two-pass LayerNorm) for a tight numerical check.
    def ref_forward(x_nchw, params, cdtype):
        h = x_nchw.reshape(x_nchw.shape[0], -1)
        w1, b1 = params[0], params[1]
        h = jnp.dot(h.astype(cdtype), w1.astype(cdtype),
                    preferred_element_type=jnp.float32) + b1
        h = jnp.maximum(h, 0.0)
        idx = 2
        for _ in range(NUM_LAYERS - 1):
            wgt, bias, gamma, beta = params[idx:idx + 4]
            idx += 4
            y = jnp.dot(h.astype(cdtype), wgt.astype(cdtype),
                        preferred_element_type=jnp.float32) + bias
            mu = jnp.mean(y, axis=-1, keepdims=True)
            var = jnp.mean(jnp.square(y - mu), axis=-1, keepdims=True)
            y = (y - mu) * (gamma * jax.lax.rsqrt(var + 1e-5)) + beta
            h = jnp.maximum(y, 0.0)
        wo, bo = params[idx], params[idx + 1]
        return jnp.dot(h.astype(cdtype), wo.astype(cdtype),
                       preferred_element_type=jnp.float32) + bo

    ref = ref_forward(x, params, COMPUTE_DTYPE)
    assert logits.shape == (B, NUM_CLASSES)
    assert jnp.allclose(logits, ref, atol=2e-3, rtol=2e-3), (
        float(jnp.max(jnp.abs(logits - ref))))

    print("KERNEL_OK")
</pallas_src>

<mosaic_0001>
module attributes {stable_mosaic.version = 11 : i64} {
  func.func @_mlp_deep_kernel(%arg0: i32, %arg1: memref<32x768xbf16, #tpu.memory_space<vmem>>, %arg2: memref<768x128xbf16, #tpu.memory_space<vmem>>, %arg3: memref<1x128xf32, #tpu.memory_space<vmem>>, %arg4: memref<3x128x128xbf16, #tpu.memory_space<vmem>>, %arg5: memref<3x3x128xf32, #tpu.memory_space<vmem>>, %arg6: memref<128x128xbf16, #tpu.memory_space<vmem>>, %arg7: memref<1x128xf32, #tpu.memory_space<vmem>>, %arg8: memref<32x128xf32, #tpu.memory_space<vmem>>) attributes {dimension_semantics = [#tpu.dimension_semantics<parallel>], iteration_bounds = array<i64: 1>, scalar_prefetch = 0 : i64, scratch_operands = 0 : i64, tpu.core_type = #tpu.core_type<tc>, window_params = [{transform_indices = @transform_0, window_bounds = array<i64: 32, 768>}, {pipeline_mode = #tpu.pipeline_mode<synchronous>, transform_indices = @transform_1, window_bounds = array<i64: 768, 128>}, {pipeline_mode = #tpu.pipeline_mode<synchronous>, transform_indices = @transform_2, window_bounds = array<i64: 1, 128>}, {pipeline_mode = #tpu.pipeline_mode<synchronous>, transform_indices = @transform_3, window_bounds = array<i64: 3, 128, 128>}, {pipeline_mode = #tpu.pipeline_mode<synchronous>, transform_indices = @transform_4, window_bounds = array<i64: 3, 3, 128>}, {pipeline_mode = #tpu.pipeline_mode<synchronous>, transform_indices = @transform_5, window_bounds = array<i64: 128, 128>}, {pipeline_mode = #tpu.pipeline_mode<synchronous>, transform_indices = @transform_6, window_bounds = array<i64: 1, 128>}, {transform_indices = @transform_7, window_bounds = array<i64: 32, 128>}]} {
    %c0 = arith.constant 0 : index
    %c0_0 = arith.constant 0 : index
    %0 = vector.load %arg1[%c0, %c0_0] : memref<32x768xbf16, #tpu.memory_space<vmem>>, vector<32x768xbf16>
    %c0_1 = arith.constant 0 : index
    %c0_2 = arith.constant 0 : index
    %1 = vector.load %arg2[%c0_1, %c0_2] : memref<768x128xbf16, #tpu.memory_space<vmem>>, vector<768x128xbf16>
    %cst = arith.constant dense<0.000000e+00> : vector<32x128xf32>
    %2 = tpu.matmul %0, %1, %cst {dimension_numbers = #tpu.dot_dimension_numbers<[1], [0], [0], [1], [0, 0, 1, 1], [], []>} : vector<32x768xbf16>, vector<768x128xbf16>, vector<32x128xf32> -> vector<32x128xf32>
    %c0_3 = arith.constant 0 : index
    %c0_4 = arith.constant 0 : index
    %3 = vector.load %arg3[%c0_3, %c0_4] : memref<1x128xf32, #tpu.memory_space<vmem>>, vector<1x128xf32>
    %4 = vector.broadcast %3 : vector<1x128xf32> to vector<32x128xf32>
    %5 = arith.addf %2, %4 : vector<32x128xf32>
    %cst_5 = arith.constant 0.000000e+00 : f32
    %6 = vector.broadcast %cst_5 : f32 to vector<32x128xf32>
    %7 = arith.maximumf %5, %6 : vector<32x128xf32>
    %c0_6 = arith.constant 0 : index
    %c0_7 = arith.constant 0 : index
    %c0_8 = arith.constant 0 : index
    %8 = vector.load %arg4[%c0_6, %c0_7, %c0_8] : memref<3x128x128xbf16, #tpu.memory_space<vmem>>, vector<1x128x128xbf16>
    %9 = vector.shape_cast %8 : vector<1x128x128xbf16> to vector<128x128xbf16>
    %c0_9 = arith.constant 0 : index
    %c0_10 = arith.constant 0 : index
    %c0_11 = arith.constant 0 : index
    %10 = vector.load %arg5[%c0_9, %c0_10, %c0_11] : memref<3x3x128xf32, #tpu.memory_space<vmem>>, vector<1x3x128xf32>
    %11 = vector.shape_cast %10 : vector<1x3x128xf32> to vector<3x128xf32>
    %12 = vector.extract_strided_slice %11 {offsets = [0, 0], sizes = [1, 128], strides = [1, 1]} : vector<3x128xf32> to vector<1x128xf32>
    %13 = vector.extract_strided_slice %11 {offsets = [1, 0], sizes = [1, 128], strides = [1, 1]} : vector<3x128xf32> to vector<1x128xf32>
    %14 = vector.extract_strided_slice %11 {offsets = [2, 0], sizes = [1, 128], strides = [1, 1]} : vector<3x128xf32> to vector<1x128xf32>
    %15 = arith.truncf %7 : vector<32x128xf32> to vector<32x128xbf16>
    %cst_12 = arith.constant dense<0.000000e+00> : vector<32x128xf32>
    %16 = tpu.matmul %15, %9, %cst_12 {dimension_numbers = #tpu.dot_dimension_numbers<[1], [0], [0], [1], [0, 0, 1, 1], [], []>} : vector<32x128xbf16>, vector<128x128xbf16>, vector<32x128xf32> -> vector<32x128xf32>
    %17 = vector.broadcast %12 : vector<1x128xf32> to vector<32x128xf32>
    %18 = arith.addf %16, %17 : vector<32x128xf32>
    %cst_13 = arith.constant dense<0.000000e+00> : vector<32xf32>
    %19 = vector.multi_reduction <add>, %18, %cst_13 [1] : vector<32x128xf32> to vector<32xf32>
    %20 = vector.shape_cast %19 : vector<32xf32> to vector<32x1xf32>
    %21 = arith.mulf %18, %18 : vector<32x128xf32>
    %cst_14 = arith.constant dense<0.000000e+00> : vector<32xf32>
    %22 = vector.multi_reduction <add>, %21, %cst_14 [1] : vector<32x128xf32> to vector<32xf32>
    %23 = vector.shape_cast %22 : vector<32xf32> to vector<32x1xf32>
    %cst_15 = arith.constant 7.812500e-03 : f32
    %24 = vector.broadcast %cst_15 : f32 to vector<32x1xf32>
    %25 = arith.mulf %20, %24 : vector<32x1xf32>
    %cst_16 = arith.constant 7.812500e-03 : f32
    %26 = vector.broadcast %cst_16 : f32 to vector<32x1xf32>
    %27 = arith.mulf %23, %26 : vector<32x1xf32>
    %28 = arith.mulf %25, %25 : vector<32x1xf32>
    %29 = arith.subf %27, %28 : vector<32x1xf32>
    %cst_17 = arith.constant 9.99999974E-6 : f32
    %30 = vector.broadcast %cst_17 : f32 to vector<32x1xf32>
    %31 = arith.addf %29, %30 : vector<32x1xf32>
    %32 = math.rsqrt %31 : vector<32x1xf32>
    %33 = vector.broadcast %13 : vector<1x128xf32> to vector<32x128xf32>
    %34 = vector.broadcast %32 : vector<32x1xf32> to vector<32x128xf32>
    %35 = arith.mulf %33, %34 : vector<32x128xf32>
    %36 = vector.broadcast %25 : vector<32x1xf32> to vector<32x128xf32>
    %37 = arith.subf %18, %36 : vector<32x128xf32>
    %38 = arith.mulf %37, %35 : vector<32x128xf32>
    %39 = vector.broadcast %14 : vector<1x128xf32> to vector<32x128xf32>
    %40 = arith.addf %38, %39 : vector<32x128xf32>
    %cst_18 = arith.constant 0.000000e+00 : f32
    %41 = vector.broadcast %cst_18 : f32 to vector<32x128xf32>
    %42 = arith.maximumf %40, %41 : vector<32x128xf32>
    %c1 = arith.constant 1 : index
    %c0_19 = arith.constant 0 : index
    %c0_20 = arith.constant 0 : index
    %43 = vector.load %arg4[%c1, %c0_19, %c0_20] : memref<3x128x128xbf16, #tpu.memory_space<vmem>>, vector<1x128x128xbf16>
    %44 = vector.shape_cast %43 : vector<1x128x128xbf16> to vector<128x128xbf16>
    %c1_21 = arith.constant 1 : index
    %c0_22 = arith.constant 0 : index
    %c0_23 = arith.constant 0 : index
    %45 = vector.load %arg5[%c1_21, %c0_22, %c0_23] : memref<3x3x128xf32, #tpu.memory_space<vmem>>, vector<1x3x128xf32>
    %46 = vector.shape_cast %45 : vector<1x3x128xf32> to vector<3x128xf32>
    %47 = vector.extract_strided_slice %46 {offsets = [0, 0], sizes = [1, 128], strides = [1, 1]} : vector<3x128xf32> to vector<1x128xf32>
    %48 = vector.extract_strided_slice %46 {offsets = [1, 0], sizes = [1, 128], strides = [1, 1]} : vector<3x128xf32> to vector<1x128xf32>
    %49 = vector.extract_strided_slice %46 {offsets = [2, 0], sizes = [1, 128], strides = [1, 1]} : vector<3x128xf32> to vector<1x128xf32>
    %50 = arith.truncf %42 : vector<32x128xf32> to vector<32x128xbf16>
    %cst_24 = arith.constant dense<0.000000e+00> : vector<32x128xf32>
    %51 = tpu.matmul %50, %44, %cst_24 {dimension_numbers = #tpu.dot_dimension_numbers<[1], [0], [0], [1], [0, 0, 1, 1], [], []>} : vector<32x128xbf16>, vector<128x128xbf16>, vector<32x128xf32> -> vector<32x128xf32>
    %52 = vector.broadcast %47 : vector<1x128xf32> to vector<32x128xf32>
    %53 = arith.addf %51, %52 : vector<32x128xf32>
    %cst_25 = arith.constant dense<0.000000e+00> : vector<32xf32>
    %54 = vector.multi_reduction <add>, %53, %cst_25 [1] : vector<32x128xf32> to vector<32xf32>
    %55 = vector.shape_cast %54 : vector<32xf32> to vector<32x1xf32>
    %56 = arith.mulf %53, %53 : vector<32x128xf32>
    %cst_26 = arith.constant dense<0.000000e+00> : vector<32xf32>
    %57 = vector.multi_reduction <add>, %56, %cst_26 [1] : vector<32x128xf32> to vector<32xf32>
    %58 = vector.shape_cast %57 : vector<32xf32> to vector<32x1xf32>
    %cst_27 = arith.constant 7.812500e-03 : f32
    %59 = vector.broadcast %cst_27 : f32 to vector<32x1xf32>
    %60 = arith.mulf %55, %59 : vector<32x1xf32>
    %cst_28 = arith.constant 7.812500e-03 : f32
    %61 = vector.broadcast %cst_28 : f32 to vector<32x1xf32>
    %62 = arith.mulf %58, %61 : vector<32x1xf32>
    %63 = arith.mulf %60, %60 : vector<32x1xf32>
    %64 = arith.subf %62, %63 : vector<32x1xf32>
    %cst_29 = arith.constant 9.99999974E-6 : f32
    %65 = vector.broadcast %cst_29 : f32 to vector<32x1xf32>
    %66 = arith.addf %64, %65 : vector<32x1xf32>
    %67 = math.rsqrt %66 : vector<32x1xf32>
    %68 = vector.broadcast %48 : vector<1x128xf32> to vector<32x128xf32>
    %69 = vector.broadcast %67 : vector<32x1xf32> to vector<32x128xf32>
    %70 = arith.mulf %68, %69 : vector<32x128xf32>
    %71 = vector.broadcast %60 : vector<32x1xf32> to vector<32x128xf32>
    %72 = arith.subf %53, %71 : vector<32x128xf32>
    %73 = arith.mulf %72, %70 : vector<32x128xf32>
    %74 = vector.broadcast %49 : vector<1x128xf32> to vector<32x128xf32>
    %75 = arith.addf %73, %74 : vector<32x128xf32>
    %cst_30 = arith.constant 0.000000e+00 : f32
    %76 = vector.broadcast %cst_30 : f32 to vector<32x128xf32>
    %77 = arith.maximumf %75, %76 : vector<32x128xf32>
    %c2 = arith.constant 2 : index
    %c0_31 = arith.constant 0 : index
    %c0_32 = arith.constant 0 : index
    %78 = vector.load %arg4[%c2, %c0_31, %c0_32] : memref<3x128x128xbf16, #tpu.memory_space<vmem>>, vector<1x128x128xbf16>
    %79 = vector.shape_cast %78 : vector<1x128x128xbf16> to vector<128x128xbf16>
    %c2_33 = arith.constant 2 : index
    %c0_34 = arith.constant 0 : index
    %c0_35 = arith.constant 0 : index
    %80 = vector.load %arg5[%c2_33, %c0_34, %c0_35] : memref<3x3x128xf32, #tpu.memory_space<vmem>>, vector<1x3x128xf32>
    %81 = vector.shape_cast %80 : vector<1x3x128xf32> to vector<3x128xf32>
    %82 = vector.extract_strided_slice %81 {offsets = [0, 0], sizes = [1, 128], strides = [1, 1]} : vector<3x128xf32> to vector<1x128xf32>
    %83 = vector.extract_strided_slice %81 {offsets = [1, 0], sizes = [1, 128], strides = [1, 1]} : vector<3x128xf32> to vector<1x128xf32>
    %84 = vector.extract_strided_slice %81 {offsets = [2, 0], sizes = [1, 128], strides = [1, 1]} : vector<3x128xf32> to vector<1x128xf32>
    %85 = arith.truncf %77 : vector<32x128xf32> to vector<32x128xbf16>
    %cst_36 = arith.constant dense<0.000000e+00> : vector<32x128xf32>
    %86 = tpu.matmul %85, %79, %cst_36 {dimension_numbers = #tpu.dot_dimension_numbers<[1], [0], [0], [1], [0, 0, 1, 1], [], []>} : vector<32x128xbf16>, vector<128x128xbf16>, vector<32x128xf32> -> vector<32x128xf32>
    %87 = vector.broadcast %82 : vector<1x128xf32> to vector<32x128xf32>
    %88 = arith.addf %86, %87 : vector<32x128xf32>
    %cst_37 = arith.constant dense<0.000000e+00> : vector<32xf32>
    %89 = vector.multi_reduction <add>, %88, %cst_37 [1] : vector<32x128xf32> to vector<32xf32>
    %90 = vector.shape_cast %89 : vector<32xf32> to vector<32x1xf32>
    %91 = arith.mulf %88, %88 : vector<32x128xf32>
    %cst_38 = arith.constant dense<0.000000e+00> : vector<32xf32>
    %92 = vector.multi_reduction <add>, %91, %cst_38 [1] : vector<32x128xf32> to vector<32xf32>
    %93 = vector.shape_cast %92 : vector<32xf32> to vector<32x1xf32>
    %cst_39 = arith.constant 7.812500e-03 : f32
    %94 = vector.broadcast %cst_39 : f32 to vector<32x1xf32>
    %95 = arith.mulf %90, %94 : vector<32x1xf32>
    %cst_40 = arith.constant 7.812500e-03 : f32
    %96 = vector.broadcast %cst_40 : f32 to vector<32x1xf32>
    %97 = arith.mulf %93, %96 : vector<32x1xf32>
    %98 = arith.mulf %95, %95 : vector<32x1xf32>
    %99 = arith.subf %97, %98 : vector<32x1xf32>
    %cst_41 = arith.constant 9.99999974E-6 : f32
    %100 = vector.broadcast %cst_41 : f32 to vector<32x1xf32>
    %101 = arith.addf %99, %100 : vector<32x1xf32>
    %102 = math.rsqrt %101 : vector<32x1xf32>
    %103 = vector.broadcast %83 : vector<1x128xf32> to vector<32x128xf32>
    %104 = vector.broadcast %102 : vector<32x1xf32> to vector<32x128xf32>
    %105 = arith.mulf %103, %104 : vector<32x128xf32>
    %106 = vector.broadcast %95 : vector<32x1xf32> to vector<32x128xf32>
    %107 = arith.subf %88, %106 : vector<32x128xf32>
    %108 = arith.mulf %107, %105 : vector<32x128xf32>
    %109 = vector.broadcast %84 : vector<1x128xf32> to vector<32x128xf32>
    %110 = arith.addf %108, %109 : vector<32x128xf32>
    %cst_42 = arith.constant 0.000000e+00 : f32
    %111 = vector.broadcast %cst_42 : f32 to vector<32x128xf32>
    %112 = arith.maximumf %110, %111 : vector<32x128xf32>
    %113 = arith.truncf %112 : vector<32x128xf32> to vector<32x128xbf16>
    %c0_43 = arith.constant 0 : index
    %c0_44 = arith.constant 0 : index
    %114 = vector.load %arg6[%c0_43, %c0_44] : memref<128x128xbf16, #tpu.memory_space<vmem>>, vector<128x128xbf16>
    %cst_45 = arith.constant dense<0.000000e+00> : vector<32x128xf32>
    %115 = tpu.matmul %113, %114, %cst_45 {dimension_numbers = #tpu.dot_dimension_numbers<[1], [0], [0], [1], [0, 0, 1, 1], [], []>} : vector<32x128xbf16>, vector<128x128xbf16>, vector<32x128xf32> -> vector<32x128xf32>
    %c0_46 = arith.constant 0 : index
    %c0_47 = arith.constant 0 : index
    %116 = vector.load %arg7[%c0_46, %c0_47] : memref<1x128xf32, #tpu.memory_space<vmem>>, vector<1x128xf32>
    %117 = vector.broadcast %116 : vector<1x128xf32> to vector<32x128xf32>
    %118 = arith.addf %115, %117 : vector<32x128xf32>
    %c0_48 = arith.constant 0 : index
    %c0_49 = arith.constant 0 : index
    %119 = vector.load %arg8[%c0_48, %c0_49] : memref<32x128xf32, #tpu.memory_space<vmem>>, vector<32x128xf32>
    tpu.vector_store %arg8[%c0_48, %c0_49], %118 {strides = array<i32>} : memref<32x128xf32, #tpu.memory_space<vmem>>, vector<32x128xf32>,
    return
  }
  func.func @transform_0(%arg0: i32) -> (i32, i32) {
    %c0_i32 = arith.constant 0 : i32
    %c0_i32_0 = arith.constant 0 : i32
    return %arg0, %c0_i32 : i32, i32
  }
  func.func @transform_1(%arg0: i32) -> (i32, i32) {
    %c0_i32 = arith.constant 0 : i32
    %c0_i32_0 = arith.constant 0 : i32
    %c0_i32_1 = arith.constant 0 : i32
    return %c0_i32, %c0_i32_0 : i32, i32
  }
  func.func @transform_2(%arg0: i32) -> (i32, i32) {
    %c0_i32 = arith.constant 0 : i32
    %c0_i32_0 = arith.constant 0 : i32
    %c0_i32_1 = arith.constant 0 : i32
    return %c0_i32, %c0_i32_0 : i32, i32
  }
  func.func @transform_3(%arg0: i32) -> (i32, i32, i32) {
    %c0_i32 = arith.constant 0 : i32
    %c0_i32_0 = arith.constant 0 : i32
    %c0_i32_1 = arith.constant 0 : i32
    %c0_i32_2 = arith.constant 0 : i32
    return %c0_i32, %c0_i32_0, %c0_i32_1 : i32, i32, i32
  }
  func.func @transform_4(%arg0: i32) -> (i32, i32, i32) {
    %c0_i32 = arith.constant 0 : i32
    %c0_i32_0 = arith.constant 0 : i32
    %c0_i32_1 = arith.constant 0 : i32
    %c0_i32_2 = arith.constant 0 : i32
    return %c0_i32, %c0_i32_0, %c0_i32_1 : i32, i32, i32
  }
  func.func @transform_5(%arg0: i32) -> (i32, i32) {
    %c0_i32 = arith.constant 0 : i32
    %c0_i32_0 = arith.constant 0 : i32
    %c0_i32_1 = arith.constant 0 : i32
    return %c0_i32, %c0_i32_0 : i32, i32
  }
  func.func @transform_6(%arg0: i32) -> (i32, i32) {
    %c0_i32 = arith.constant 0 : i32
    %c0_i32_0 = arith.constant 0 : i32
    %c0_i32_1 = arith.constant 0 : i32
    return %c0_i32, %c0_i32_0 : i32, i32
  }
  func.func @transform_7(%arg0: i32) -> (i32, i32) {
    %c0_i32 = arith.constant 0 : i32
    %c0_i32_0 = arith.constant 0 : i32
    return %arg0, %c0_i32 : i32, i32
  }
}

</mosaic_0001>

<llo_original>
// kernel: tpu_custom_call.1
$region0: #{tpu_custom_call.1}
  #allocation0 [shape = 'u32[]', space=smem, size = 0x4, offset = 0x4, fixed_abs, tag = 'smem constant byte address 0x4 - core index']
  #allocation1 [shape = 'u32[144,128]{1,0:T(1,128)}', space=vmem, size = 0x12000, scoped, tag = 'internal scratch']
  %s0 = inlined_call_operand.hbm [shape: bf16[32,768], index: 0, kind: input, shape index: {}]
  %s1 = inlined_call_operand.hbm [shape: bf16[768,128], index: 1, kind: input, shape index: {}]
  %s2 = inlined_call_operand.vmem [shape: f32[1,128], index: 2, kind: input, shape index: {}]
  %s3 = inlined_call_operand.hbm [shape: bf16[3,128,128], index: 3, kind: input, shape index: {}]
  %s4 = inlined_call_operand.vmem [shape: f32[3,3,128], index: 4, kind: input, shape index: {}]
  %s5 = inlined_call_operand.hbm [shape: bf16[128,128], index: 5, kind: input, shape index: {}]
  %s6 = inlined_call_operand.vmem [shape: f32[1,128], index: 6, kind: input, shape index: {}]
  %s7 = inlined_call_operand.hbm [shape: f32[32,128], index: 7, kind: output, shape index: {}]
  %s8 = sld [smem:[#allocation0]]
  $region54: #{tpu_custom_call.1} parent=0
    _
  %s10 = ssub.s32 1, %s8
  %s11 = scalar_select 0, %s10, %s8
  $region1: #{tpu_custom_call.1} parent=0
    #allocation2 [shape = 'u8[49152]{0}', space=vmem, size = 0xc000, scoped, tag = 'input window, operand 0, single buffered']
    #allocation3 [shape = 's32[1]{0}', space=sflag, size = 0x4, scoped, tag = 'scoped memory for tpu_custom_call.1']
    #allocation4 [shape = 's32[1]{0}', space=sflag, size = 0x4, scoped, tag = 'scoped memory for tpu_custom_call.1']
    #allocation5 [shape = 'u8[196608]{0}', space=vmem, size = 0x30000, scoped, tag = 'input window, operand 1, single buffered']
    #allocation6 [shape = 's32[1]{0}', space=sflag, size = 0x4, scoped, tag = 'scoped memory for tpu_custom_call.1']
    #allocation7 [shape = 'u8[98304]{0}', space=vmem, size = 0x18000, scoped, tag = 'input window, operand 3, single buffered']
    #allocation8 [shape = 'u8[32768]{0}', space=vmem, size = 0x8000, scoped, tag = 'input window, operand 5, single buffered']
    #allocation9 [shape = 's32[1]{0}', space=sflag, size = 0x4, scoped, tag = 'scoped memory for tpu_custom_call.1']
    #allocation10 [shape = 'u8[16384]{0}', space=vmem, size = 0x4000, scoped, tag = 'output window, operand 0, single buffered']
    %12 = vsyncpa [#allocation3], 0
    %13 = vsyncpa [#allocation6], 0
    %14 = vsyncpa [#allocation9], 0
    %15 = vsyncpa [#allocation4], 0
    // Predicated region
    $region2: #{tpu_custom_call.1} parent=1 // pred_check
      _
    $region3: #{tpu_custom_call.1} parent=1 // pred_check_branch
      %17 = sbr.rel (0) target = $region5
    $region4: #{tpu_custom_call.1} parent=1 // pred_region
      %s19 = ssub.s32 1536, 1536
      %20 = vsyncadd [#allocation3], %s19
      %s21 = sshll.u32 [#allocation2], 4
      %s22 = int_to_ptr.vmem [resolvable:$true] %s21
      %27 = dma.hbm_to_vmem [thread:$0]  %s0, 1536, %s22, [#allocation3], 384, 384, 24
    $region5: #{tpu_custom_call.1} parent=1 // pred_fallthru
      _
    // Predicated region
    $region6: #{tpu_custom_call.1} parent=1 // pred_check
      _
    $region7: #{tpu_custom_call.1} parent=1 // pred_check_branch
      %29 = sbr.rel (0) target = $region9
    $region8: #{tpu_custom_call.1} parent=1 // pred_region
      %s31 = ssub.s32 6144, 6144
      %32 = vsyncadd [#allocation6], %s31
      %s33 = sshll.u32 [#allocation5], 4
      %s34 = int_to_ptr.vmem [resolvable:$true] %s33
      %39 = dma.hbm_to_vmem [thread:$0]  %s1, 6144, %s34, [#allocation6], 64, 64, 4
    $region9: #{tpu_custom_call.1} parent=1 // pred_fallthru
      _
    // Predicated region
    $region10: #{tpu_custom_call.1} parent=1 // pred_check
      _
    $region11: #{tpu_custom_call.1} parent=1 // pred_check_branch
      %41 = sbr.rel (0) target = $region13
    $region12: #{tpu_custom_call.1} parent=1 // pred_region
      _
    $region13: #{tpu_custom_call.1} parent=1 // pred_fallthru
      _
    // Predicated region
    $region14: #{tpu_custom_call.1} parent=1 // pred_check
      _
    $region15: #{tpu_custom_call.1} parent=1 // pred_check_branch
      %43 = sbr.rel (0) target = $region17
    $region16: #{tpu_custom_call.1} parent=1 // pred_region
      %s45 = ssub.s32 3072, 3072
      %46 = vsyncadd [#allocation6], %s45
      %s47 = sshll.u32 [#allocation7], 4
      %s48 = int_to_ptr.vmem [resolvable:$true] %s47
      %53 = dma.hbm_to_vmem [thread:$0]  %s3, 3072, %s48, [#allocation6], 64, 64, 4
    $region17: #{tpu_custom_call.1} parent=1 // pred_fallthru
      _
    // Predicated region
    $region18: #{tpu_custom_call.1} parent=1 // pred_check
      _
    $region19: #{tpu_custom_call.1} parent=1 // pred_check_branch
      %55 = sbr.rel (0) target = $region21
    $region20: #{tpu_custom_call.1} parent=1 // pred_region
      _
    $region21: #{tpu_custom_call.1} parent=1 // pred_fallthru
      _
    // Predicated region
    $region22: #{tpu_custom_call.1} parent=1 // pred_check
      _
    $region23: #{tpu_custom_call.1} parent=1 // pred_check_branch
      %57 = sbr.rel (0) target = $region25
    $region24: #{tpu_custom_call.1} parent=1 // pred_region
      %s59 = ssub.s32 1024, 1024
      %60 = vsyncadd [#allocation9], %s59
      %s61 = sshll.u32 [#allocation8], 4
      %s62 = int_to_ptr.vmem [resolvable:$true] %s61
      %67 = dma.hbm_to_vmem [thread:$0]  %s5, 1024, %s62, [#allocation9], 64, 64, 4
    $region25: #{tpu_custom_call.1} parent=1 // pred_fallthru
      _
    // Predicated region
    $region26: #{tpu_custom_call.1} parent=1 // pred_check
      _
    $region27: #{tpu_custom_call.1} parent=1 // pred_check_branch
      %69 = sbr.rel (0) target = $region29
    $region28: #{tpu_custom_call.1} parent=1 // pred_region
      _
    $region29: #{tpu_custom_call.1} parent=1 // pred_fallthru
      _
    // Predicated region
    $region30: #{tpu_custom_call.1} parent=1 // pred_check
      _
    $region31: #{tpu_custom_call.1} parent=1 // pred_check_branch
      %71 = sbr.rel (0) target = $region33
    $region32: #{tpu_custom_call.1} parent=1 // pred_region
      %72 = dma.done [#allocation3], 1536
    $region33: #{tpu_custom_call.1} parent=1 // pred_fallthru
      _
    // Predicated region
    $region34: #{tpu_custom_call.1} parent=1 // pred_check
      _
    $region35: #{tpu_custom_call.1} parent=1 // pred_check_branch
      %74 = sbr.rel (0) target = $region37
    $region36: #{tpu_custom_call.1} parent=1 // pred_region
      %75 = dma.done [#allocation6], 6144
    $region37: #{tpu_custom_call.1} parent=1 // pred_fallthru
      _
    // Predicated region
    $region38: #{tpu_custom_call.1} parent=1 // pred_check
      _
    $region39: #{tpu_custom_call.1} parent=1 // pred_check_branch
      %77 = sbr.rel (0) target = $region41
    $region40: #{tpu_custom_call.1} parent=1 // pred_region
      %78 = dma.done [#allocation6], 3072
    $region41: #{tpu_custom_call.1} parent=1 // pred_fallthru
      _
    // Predicated region
    $region42: #{tpu_custom_call.1} parent=1 // pred_check
      _
    $region43: #{tpu_custom_call.1} parent=1 // pred_check_branch
      %80 = sbr.rel (0) target = $region45
    $region44: #{tpu_custom_call.1} parent=1 // pred_region
      %81 = dma.done [#allocation9], 1024
    $region45: #{tpu_custom_call.1} parent=1 // pred_fallthru
      _
    %v83 = vld [vmem:[#allocation2] sm:$0xff]
    %v84 = vld [vmem:[#allocation2 + $0x8] sm:$0xff]
    %v85 = vld [vmem:[#allocation2 + $0x10] sm:$0xff]
    %v86 = vld [vmem:[#allocation2 + $0x18] sm:$0xff]
    %v87 = vld [vmem:[#allocation2 + $0x20] sm:$0xff]
    %v88 = vld [vmem:[#allocation2 + $0x28] sm:$0xff]
    %v89 = vld [vmem:[#allocation2 + $0x30] sm:$0xff]
    %v90 = vld [vmem:[#allocation2 + $0x38] sm:$0xff]
    %v91 = vld [vmem:[#allocation2 + $0x40] sm:$0xff]
    %v92 = vld [vmem:[#allocation2 + $0x48] sm:$0xff]
    %v93 = vld [vmem:[#allocation2 + $0x50] sm:$0xff]
    %v94 = vld [vmem:[#allocation2 + $0x58] sm:$0xff]
    %v95 = vld [vmem:[#allocation5] sm:$0xf]
    %v96 = vld [vmem:[#allocation5 + $0x4] sm:$0xf]
    %v97 = vld [vmem:[#allocation5 + $0x8] sm:$0xf]
    %v98 = vld [vmem:[#allocation5 + $0xc] sm:$0xf]
    %v99 = vld [vmem:[#allocation5 + $0x10] sm:$0xf]
    %v100 = vld [vmem:[#allocation5 + $0x14] sm:$0xf]
    %v101 = vld [vmem:[#allocation5 + $0x18] sm:$0xf]
    %v102 = vld [vmem:[#allocation5 + $0x1c] sm:$0xf]
    %v103 = vld [vmem:[#allocation5 + $0x20] sm:$0xf]
    %v104 = vld [vmem:[#allocation5 + $0x24] sm:$0xf]
    %v105 = vld [vmem:[#allocation5 + $0x28] sm:$0xf]
    %v106 = vld [vmem:[#allocation5 + $0x2c] sm:$0xf]
    %v107 = vld [vmem:[#allocation5 + $0x30] sm:$0xf]
    %v108 = vld [vmem:[#allocation5 + $0x34] sm:$0xf]
    %v109 = vld [vmem:[#allocation5 + $0x38] sm:$0xf]
    %v110 = vld [vmem:[#allocation5 + $0x3c] sm:$0xf]
    %v111 = vld [vmem:[#allocation5 + $0x40] sm:$0xf]
    %v112 = vld [vmem:[#allocation5 + $0x44] sm:$0xf]
    %v113 = vld [vmem:[#allocation5 + $0x48] sm:$0xf]
    %v114 = vld [vmem:[#allocation5 + $0x4c] sm:$0xf]
    %v115 = vld [vmem:[#allocation5 + $0x50] sm:$0xf]
    %v116 = vld [vmem:[#allocation5 + $0x54] sm:$0xf]
    %v117 = vld [vmem:[#allocation5 + $0x58] sm:$0xf]
    %v118 = vld [vmem:[#allocation5 + $0x5c] sm:$0xf]
    %v119 = vld [vmem:[#allocation5 + $0x60] sm:$0xf]
    %v120 = vld [vmem:[#allocation5 + $0x64] sm:$0xf]
    %v121 = vld [vmem:[#allocation5 + $0x68] sm:$0xf]
    %v122 = vld [vmem:[#allocation5 + $0x6c] sm:$0xf]
    %v123 = vld [vmem:[#allocation5 + $0x70] sm:$0xf]
    %v124 = vld [vmem:[#allocation5 + $0x74] sm:$0xf]
    %v125 = vld [vmem:[#allocation5 + $0x78] sm:$0xf]
    %v126 = vld [vmem:[#allocation5 + $0x7c] sm:$0xf]
    %v127 = vld [vmem:[#allocation5 + $0x80] sm:$0xf]
    %v128 = vld [vmem:[#allocation5 + $0x84] sm:$0xf]
    %v129 = vld [vmem:[#allocation5 + $0x88] sm:$0xf]
    %v130 = vld [vmem:[#allocation5 + $0x8c] sm:$0xf]
    %v131 = vld [vmem:[#allocation5 + $0x90] sm:$0xf]
    %v132 = vld [vmem:[#allocation5 + $0x94] sm:$0xf]
    %v133 = vld [vmem:[#allocation5 + $0x98] sm:$0xf]
    %v134 = vld [vmem:[#allocation5 + $0x9c] sm:$0xf]
    %v135 = vld [vmem:[#allocation5 + $0xa0] sm:$0xf]
    %v136 = vld [vmem:[#allocation5 + $0xa4] sm:$0xf]
    %v137 = vld [vmem:[#allocation5 + $0xa8] sm:$0xf]
    %v138 = vld [vmem:[#allocation5 + $0xac] sm:$0xf]
    %v139 = vld [vmem:[#allocation5 + $0xb0] sm:$0xf]
    %v140 = vld [vmem:[#allocation5 + $0xb4] sm:$0xf]
    %v141 = vld [vmem:[#allocation5 + $0xb8] sm:$0xf]
    %v142 = vld [vmem:[#allocation5 + $0xbc] sm:$0xf]
    %v143 = vld [vmem:[#allocation5 + $0xc0] sm:$0xf]
    %v144 = vld [vmem:[#allocation5 + $0xc4] sm:$0xf]
    %v145 = vld [vmem:[#allocation5 + $0xc8] sm:$0xf]
    %v146 = vld [vmem:[#allocation5 + $0xcc] sm:$0xf]
    %v147 = vld [vmem:[#allocation5 + $0xd0] sm:$0xf]
    %v148 = vld [vmem:[#allocation5 + $0xd4] sm:$0xf]
    %v149 = vld [vmem:[#allocation5 + $0xd8] sm:$0xf]
    %v150 = vld [vmem:[#allocation5 + $0xdc] sm:$0xf]
    %v151 = vld [vmem:[#allocation5 + $0xe0] sm:$0xf]
    %v152 = vld [vmem:[#allocation5 + $0xe4] sm:$0xf]
    %v153 = vld [vmem:[#allocation5 + $0xe8] sm:$0xf]
    %v154 = vld [vmem:[#allocation5 + $0xec] sm:$0xf]
    %v155 = vld [vmem:[#allocation5 + $0xf0] sm:$0xf]
    %v156 = vld [vmem:[#allocation5 + $0xf4] sm:$0xf]
    %v157 = vld [vmem:[#allocation5 + $0xf8] sm:$0xf]
    %v158 = vld [vmem:[#allocation5 + $0xfc] sm:$0xf]
    %v159 = vld [vmem:[#allocation5 + $0x100] sm:$0xf]
    %v160 = vld [vmem:[#allocation5 + $0x104] sm:$0xf]
    %v161 = vld [vmem:[#allocation5 + $0x108] sm:$0xf]
    %v162 = vld [vmem:[#allocation5 + $0x10c] sm:$0xf]
    %v163 = vld [vmem:[#allocation5 + $0x110] sm:$0xf]
    %v164 = vld [vmem:[#allocation5 + $0x114] sm:$0xf]
    %v165 = vld [vmem:[#allocation5 + $0x118] sm:$0xf]
    %v166 = vld [vmem:[#allocation5 + $0x11c] sm:$0xf]
    %v167 = vld [vmem:[#allocation5 + $0x120] sm:$0xf]
    %v168 = vld [vmem:[#allocation5 + $0x124] sm:$0xf]
    %v169 = vld [vmem:[#allocation5 + $0x128] sm:$0xf]
    %v170 = vld [vmem:[#allocation5 + $0x12c] sm:$0xf]
    %v171 = vld [vmem:[#allocation5 + $0x130] sm:$0xf]
    %v172 = vld [vmem:[#allocation5 + $0x134] sm:$0xf]
    %v173 = vld [vmem:[#allocation5 + $0x138] sm:$0xf]
    %v174 = vld [vmem:[#allocation5 + $0x13c] sm:$0xf]
    %v175 = vld [vmem:[#allocation5 + $0x140] sm:$0xf]
    %v176 = vld [vmem:[#allocation5 + $0x144] sm:$0xf]
    %v177 = vld [vmem:[#allocation5 + $0x148] sm:$0xf]
    %v178 = vld [vmem:[#allocation5 + $0x14c] sm:$0xf]
    %v179 = vld [vmem:[#allocation5 + $0x150] sm:$0xf]
    %v180 = vld [vmem:[#allocation5 + $0x154] sm:$0xf]
    %v181 = vld [vmem:[#allocation5 + $0x158] sm:$0xf]
    %v182 = vld [vmem:[#allocation5 + $0x15c] sm:$0xf]
    %v183 = vld [vmem:[#allocation5 + $0x160] sm:$0xf]
    %v184 = vld [vmem:[#allocation5 + $0x164] sm:$0xf]
    %v185 = vld [vmem:[#allocation5 + $0x168] sm:$0xf]
    %v186 = vld [vmem:[#allocation5 + $0x16c] sm:$0xf]
    %v187 = vld [vmem:[#allocation5 + $0x170] sm:$0xf]
    %v188 = vld [vmem:[#allocation5 + $0x174] sm:$0xf]
    %v189 = vld [vmem:[#allocation5 + $0x178] sm:$0xf]
    %v190 = vld [vmem:[#allocation5 + $0x17c] sm:$0xf]
    %v191 = vld [vmem:[%s2] sm:$0x1]
    %v193 = vlaneseq
    %v194 = vshrl.u32 %v193, 7
    %v195 = vsub.s32 0, %v194
    %v196 = vrot.slane %v191, %v195
    %v210 = vunpack.c.l.b16 %v83
    %v211 = vunpack.c.h.b16 %v83
    %v212 = vunpack.c.l.b16 %v84
    %v213 = vunpack.c.h.b16 %v84
    %v214 = vunpack.c.l.b16 %v85
    %v215 = vunpack.c.h.b16 %v85
    %v216 = vunpack.c.l.b16 %v86
    %v217 = vunpack.c.h.b16 %v86
    %v218 = vunpack.c.l.b16 %v87
    %v219 = vunpack.c.h.b16 %v87
    %v220 = vunpack.c.l.b16 %v88
    %v221 = vunpack.c.h.b16 %v88
    %v222 = vunpack.c.l.b16 %v89
    %v223 = vunpack.c.h.b16 %v89
    %v224 = vunpack.c.l.b16 %v90
    %v225 = vunpack.c.h.b16 %v90
    %v226 = vunpack.c.l.b16 %v91
    %v227 = vunpack.c.h.b16 %v91
    %v228 = vunpack.c.l.b16 %v92
    %v229 = vunpack.c.h.b16 %v92
    %v230 = vunpack.c.l.b16 %v93
    %v231 = vunpack.c.h.b16 %v93
    %v232 = vunpack.c.l.b16 %v94
    %v233 = vunpack.c.h.b16 %v94
    %v234 = vpack.c.b16 %v216, %v210
    %v235 = vpack.c.b16 %v217, %v211
    %v236 = vpack.c.b16 %v218, %v212
    %v237 = vpack.c.b16 %v219, %v213
    %v238 = vpack.c.b16 %v220, %v214
    %v239 = vpack.c.b16 %v221, %v215
    %v240 = vpack.c.b16 %v228, %v222
    %v241 = vpack.c.b16 %v229, %v223
    %v242 = vpack.c.b16 %v230, %v224
    %v243 = vpack.c.b16 %v231, %v225
    %v244 = vpack.c.b16 %v232, %v226
    %v245 = vpack.c.b16 %v233, %v227
    %v354 = vunpack.c.l.b16 %v95
    %v355 = vunpack.c.l.b16 %v96
    %v356 = vunpack.c.l.b16 %v97
    %v357 = vunpack.c.l.b16 %v98
    %v358 = vunpack.c.l.b16 %v99
    %v359 = vunpack.c.l.b16 %v100
    %v360 = vunpack.c.l.b16 %v101
    %v361 = vunpack.c.l.b16 %v102
    %v362 = vunpack.c.l.b16 %v103
    %v363 = vunpack.c.l.b16 %v104
    %v364 = vunpack.c.l.b16 %v105
    %v365 = vunpack.c.l.b16 %v106
    %v366 = vunpack.c.l.b16 %v107
    %v367 = vunpack.c.l.b16 %v108
    %v368 = vunpack.c.l.b16 %v109
    %v369 = vunpack.c.l.b16 %v110
    %v370 = vunpack.c.l.b16 %v111
    %v371 = vunpack.c.l.b16 %v112
    %v372 = vunpack.c.l.b16 %v113
    %v373 = vunpack.c.l.b16 %v114
    %v374 = vunpack.c.l.b16 %v115
    %v375 = vunpack.c.l.b16 %v116
    %v376 = vunpack.c.l.b16 %v117
    %v377 = vunpack.c.l.b16 %v118
    %v378 = vunpack.c.l.b16 %v119
    %v379 = vunpack.c.l.b16 %v120
    %v380 = vunpack.c.l.b16 %v121
    %v381 = vunpack.c.l.b16 %v122
    %v382 = vunpack.c.l.b16 %v123
    %v383 = vunpack.c.l.b16 %v124
    %v384 = vunpack.c.l.b16 %v125
    %v385 = vunpack.c.l.b16 %v126
    %v386 = vunpack.c.l.b16 %v127
    %v387 = vunpack.c.l.b16 %v128
    %v388 = vunpack.c.l.b16 %v129
    %v389 = vunpack.c.l.b16 %v130
    %v390 = vunpack.c.l.b16 %v131
    %v391 = vunpack.c.l.b16 %v132
    %v392 = vunpack.c.l.b16 %v133
    %v393 = vunpack.c.l.b16 %v134
    %v394 = vunpack.c.l.b16 %v135
    %v395 = vunpack.c.l.b16 %v136
    %v396 = vunpack.c.l.b16 %v137
    %v397 = vunpack.c.l.b16 %v138
    %v398 = vunpack.c.l.b16 %v139
    %v399 = vunpack.c.l.b16 %v140
    %v400 = vunpack.c.l.b16 %v141
    %v401 = vunpack.c.l.b16 %v142
    %v402 = vunpack.c.l.b16 %v143
    %v403 = vunpack.c.l.b16 %v144
    %v404 = vunpack.c.l.b16 %v145
    %v405 = vunpack.c.l.b16 %v146
    %v406 = vunpack.c.l.b16 %v147
    %v407 = vunpack.c.l.b16 %v148
    %v408 = vunpack.c.l.b16 %v149
    %v409 = vunpack.c.l.b16 %v150
    %v410 = vunpack.c.l.b16 %v151
    %v411 = vunpack.c.l.b16 %v152
    %v412 = vunpack.c.l.b16 %v153
    %v413 = vunpack.c.l.b16 %v154
    %v414 = vunpack.c.l.b16 %v155
    %v415 = vunpack.c.l.b16 %v156
    %v416 = vunpack.c.l.b16 %v157
    %v417 = vunpack.c.l.b16 %v158
    %v418 = vunpack.c.l.b16 %v159
    %v419 = vunpack.c.l.b16 %v160
    %v420 = vunpack.c.l.b16 %v161
    %v421 = vunpack.c.l.b16 %v162
    %v422 = vunpack.c.l.b16 %v163
    %v423 = vunpack.c.l.b16 %v164
    %v424 = vunpack.c.l.b16 %v165
    %v425 = vunpack.c.l.b16 %v166
    %v426 = vunpack.c.l.b16 %v167
    %v427 = vunpack.c.l.b16 %v168
    %v428 = vunpack.c.l.b16 %v169
    %v429 = vunpack.c.l.b16 %v170
    %v430 = vunpack.c.l.b16 %v171
    %v431 = vunpack.c.l.b16 %v172
    %v432 = vunpack.c.l.b16 %v173
    %v433 = vunpack.c.l.b16 %v174
    %v434 = vunpack.c.l.b16 %v175
    %v435 = vunpack.c.l.b16 %v176
    %v436 = vunpack.c.l.b16 %v177
    %v437 = vunpack.c.l.b16 %v178
    %v438 = vunpack.c.l.b16 %v179
    %v439 = vunpack.c.l.b16 %v180
    %v440 = vunpack.c.l.b16 %v181
    %v441 = vunpack.c.l.b16 %v182
    %v442 = vunpack.c.l.b16 %v183
    %v443 = vunpack.c.l.b16 %v184
    %v444 = vunpack.c.l.b16 %v185
    %v445 = vunpack.c.l.b16 %v186
    %v446 = vunpack.c.l.b16 %v187
    %v447 = vunpack.c.l.b16 %v188
    %v448 = vunpack.c.l.b16 %v189
    %v449 = vunpack.c.l.b16 %v190
    %v450 = vpack.c.b16 %v355, %v354
    %v451 = vpack.c.b16 %v357, %v356
    %v452 = vpack.c.b16 %v359, %v358
    %v453 = vpack.c.b16 %v361, %v360
    %v454 = vpack.c.b16 %v363, %v362
    %v455 = vpack.c.b16 %v365, %v364
    %v456 = vpack.c.b16 %v367, %v366
    %v457 = vpack.c.b16 %v369, %v368
    %v458 = vpack.c.b16 %v371, %v370
    %v459 = vpack.c.b16 %v373, %v372
    %v460 = vpack.c.b16 %v375, %v374
    %v461 = vpack.c.b16 %v377, %v376
    %v462 = vpack.c.b16 %v379, %v378
    %v463 = vpack.c.b16 %v381, %v380
    %v464 = vpack.c.b16 %v383, %v382
    %v465 = vpack.c.b16 %v385, %v384
    %v466 = vpack.c.b16 %v387, %v386
    %v467 = vpack.c.b16 %v389, %v388
    %v468 = vpack.c.b16 %v391, %v390
    %v469 = vpack.c.b16 %v393, %v392
    %v470 = vpack.c.b16 %v395, %v394
    %v471 = vpack.c.b16 %v397, %v396
    %v472 = vpack.c.b16 %v399, %v398
    %v473 = vpack.c.b16 %v401, %v400
    %v474 = vpack.c.b16 %v403, %v402
    %v475 = vpack.c.b16 %v405, %v404
    %v476 = vpack.c.b16 %v407, %v406
    %v477 = vpack.c.b16 %v409, %v408
    %v478 = vpack.c.b16 %v411, %v410
    %v479 = vpack.c.b16 %v413, %v412
    %v480 = vpack.c.b16 %v415, %v414
    %v481 = vpack.c.b16 %v417, %v416
    %v482 = vpack.c.b16 %v419, %v418
    %v483 = vpack.c.b16 %v421, %v420
    %v484 = vpack.c.b16 %v423, %v422
    %v485 = vpack.c.b16 %v425, %v424
    %v486 = vpack.c.b16 %v427, %v426
    %v487 = vpack.c.b16 %v429, %v428
    %v488 = vpack.c.b16 %v431, %v430
    %v489 = vpack.c.b16 %v433, %v432
    %v490 = vpack.c.b16 %v435, %v434
    %v491 = vpack.c.b16 %v437, %v436
    %v492 = vpack.c.b16 %v439, %v438
    %v493 = vpack.c.b16 %v441, %v440
    %v494 = vpack.c.b16 %v443, %v442
    %v495 = vpack.c.b16 %v445, %v444
    %v496 = vpack.c.b16 %v447, %v446
    %v497 = vpack.c.b16 %v449, %v448
    %546 = vmatprep.subr.bf16.mxu0 0
    %547 = vmatpush1.bf16.msra.mxu0 %v450
    %548 = vmatprep.subr.bf16.mxu0 0
    %549 = vmatpush1.bf16.msra.mxu0 %v451
    %550 = vmatprep.subr.bf16.mxu0 0
    %551 = vmatpush1.bf16.msra.mxu0 %v452
    %552 = vmatprep.subr.bf16.mxu0 0
    %553 = vmatpush1.bf16.msra.mxu0 %v453
    %554 = vmatprep.subr.bf16.mxu0 0
    %555 = vmatpush1.bf16.msra.mxu0 %v454
    %556 = vmatprep.subr.bf16.mxu0 0
    %557 = vmatpush1.bf16.msra.mxu0 %v455
    %558 = vmatprep.subr.bf16.mxu0 0
    %559 = vmatpush1.bf16.msra.mxu0 %v456
    %560 = vmatprep.subr.bf16.mxu0 0
    %561 = vmatpush1.bf16.msra.mxu0 %v457
    %562 = vmatprep.subr.bf16.mxu0 0
    %563 = vmatpush1.bf16.msra.mxu0 %v458
    %564 = vmatprep.subr.bf16.mxu0 0
    %565 = vmatpush1.bf16.msra.mxu0 %v459
    %566 = vmatprep.subr.bf16.mxu0 0
    %567 = vmatpush1.bf16.msra.mxu0 %v460
    %568 = vmatprep.subr.bf16.mxu0 0
    %569 = vmatpush1.bf16.msra.mxu0 %v461
    %570 = vmatprep.subr.bf16.mxu0 0
    %571 = vmatpush1.bf16.msra.mxu0 %v462
    %572 = vmatprep.subr.bf16.mxu0 0
    %573 = vmatpush1.bf16.msra.mxu0 %v463
    %574 = vmatprep.subr.bf16.mxu0 0
    %575 = vmatpush1.bf16.msra.mxu0 %v464
    %576 = vmatprep.subr.bf16.mxu0 0
    %577 = vmatpush1.bf16.msra.mxu0 %v465
    %578 = vmatprep.mubr.bf16.mxu0 %v235
    %579 = vmatmul.mubr.bf16.gmra.mrb[0].mxu0 %v234
    %v580 = vpop.f32.mrb[0].mxu0
    %v581 = vadd.f32 %v196, %v580
    %v582 = vpop.f32.mrb[0].mxu0
    %v583 = vpop.f32.mrb[0].mxu0
    %v584 = vadd.f32 %v196, %v583
    %v585 = vpop.f32.mrb[0].mxu0
    %586 = vmatprep.mubr.bf16.mxu0 %v241
    %587 = vmatmul.mubr.bf16.gmra.mrb[0].mxu0 %v240
    %v588 = vpop.f32.mrb[0].mxu0
    %v589 = vadd.f32 %v196, %v588
    %v590 = vpop.f32.mrb[0].mxu0
    %v591 = vpop.f32.mrb[0].mxu0
    %v592 = vadd.f32 %v196, %v591
    %v593 = vpop.f32.mrb[0].mxu0
    %594 = vdwg.mxu0
    %595 = vmatprep.subr.bf16.mxu0 0
    %596 = vmatpush1.bf16.msra.mxu0 %v466
    %597 = vmatprep.subr.bf16.mxu0 0
    %598 = vmatpush1.bf16.msra.mxu0 %v467
    %599 = vmatprep.subr.bf16.mxu0 0
    %600 = vmatpush1.bf16.msra.mxu0 %v468
    %601 = vmatprep.subr.bf16.mxu0 0
    %602 = vmatpush1.bf16.msra.mxu0 %v469
    %603 = vmatprep.subr.bf16.mxu0 0
    %604 = vmatpush1.bf16.msra.mxu0 %v470
    %605 = vmatprep.subr.bf16.mxu0 0
    %606 = vmatpush1.bf16.msra.mxu0 %v471
    %607 = vmatprep.subr.bf16.mxu0 0
    %608 = vmatpush1.bf16.msra.mxu0 %v472
    %609 = vmatprep.subr.bf16.mxu0 0
    %610 = vmatpush1.bf16.msra.mxu0 %v473
    %611 = vmatprep.subr.bf16.mxu0 0
    %612 = vmatpush1.bf16.msra.mxu0 %v474
    %613 = vmatprep.subr.bf16.mxu0 0
    %614 = vmatpush1.bf16.msra.mxu0 %v475
    %615 = vmatprep.subr.bf16.mxu0 0
    %616 = vmatpush1.bf16.msra.mxu0 %v476
    %617 = vmatprep.subr.bf16.mxu0 0
    %618 = vmatpush1.bf16.msra.mxu0 %v477
    %619 = vmatprep.subr.bf16.mxu0 0
    %620 = vmatpush1.bf16.msra.mxu0 %v478
    %621 = vmatprep.subr.bf16.mxu0 0
    %622 = vmatpush1.bf16.msra.mxu0 %v479
    %623 = vmatprep.subr.bf16.mxu0 0
    %624 = vmatpush1.bf16.msra.mxu0 %v480
    %625 = vmatprep.subr.bf16.mxu0 0
    %626 = vmatpush1.bf16.msra.mxu0 %v481
    %627 = vmatprep.mubr.bf16.mxu0 %v237
    %628 = vmatmul.mubr.bf16.gmra.mrb[0].mxu0 %v236
    %v629 = vpop.f32.mrb[0].mxu0
    %v630 = vadd.f32 %v581, %v629
    %v631 = vpop.f32.mrb[0].mxu0
    %v632 = vpop.f32.mrb[0].mxu0
    %v633 = vadd.f32 %v584, %v632
    %v634 = vpop.f32.mrb[0].mxu0
    %635 = vmatprep.mubr.bf16.mxu0 %v243
    %636 = vmatmul.mubr.bf16.gmra.mrb[0].mxu0 %v242
    %v637 = vpop.f32.mrb[0].mxu0
    %v638 = vadd.f32 %v589, %v637
    %v639 = vpop.f32.mrb[0].mxu0
    %v640 = vpop.f32.mrb[0].mxu0
    %v641 = vadd.f32 %v592, %v640
    %v642 = vpop.f32.mrb[0].mxu0
    %643 = vdwg.mxu0
    %644 = vmatprep.subr.bf16.mxu0 0
    %645 = vmatpush1.bf16.msra.mxu0 %v482
    %646 = vmatprep.subr.bf16.mxu0 0
    %647 = vmatpush1.bf16.msra.mxu0 %v483
    %648 = vmatprep.subr.bf16.mxu0 0
    %649 = vmatpush1.bf16.msra.mxu0 %v484
    %650 = vmatprep.subr.bf16.mxu0 0
    %651 = vmatpush1.bf16.msra.mxu0 %v485
    %652 = vmatprep.subr.bf16.mxu0 0
    %653 = vmatpush1.bf16.msra.mxu0 %v486
    %654 = vmatprep.subr.bf16.mxu0 0
    %655 = vmatpush1.bf16.msra.mxu0 %v487
    %656 = vmatprep.subr.bf16.mxu0 0
    %657 = vmatpush1.bf16.msra.mxu0 %v488
    %658 = vmatprep.subr.bf16.mxu0 0
    %659 = vmatpush1.bf16.msra.mxu0 %v489
    %660 = vmatprep.subr.bf16.mxu0 0
    %661 = vmatpush1.bf16.msra.mxu0 %v490
    %662 = vmatprep.subr.bf16.mxu0 0
    %663 = vmatpush1.bf16.msra.mxu0 %v491
    %664 = vmatprep.subr.bf16.mxu0 0
    %665 = vmatpush1.bf16.msra.mxu0 %v492
    %666 = vmatprep.subr.bf16.mxu0 0
    %667 = vmatpush1.bf16.msra.mxu0 %v493
    %668 = vmatprep.subr.bf16.mxu0 0
    %669 = vmatpush1.bf16.msra.mxu0 %v494
    %670 = vmatprep.subr.bf16.mxu0 0
    %671 = vmatpush1.bf16.msra.mxu0 %v495
    %672 = vmatprep.subr.bf16.mxu0 0
    %673 = vmatpush1.bf16.msra.mxu0 %v496
    %674 = vmatprep.subr.bf16.mxu0 0
    %675 = vmatpush1.bf16.msra.mxu0 %v497
    %676 = vmatprep.mubr.bf16.mxu0 %v239
    %677 = vmatmul.mubr.bf16.gmra.mrb[0].mxu0 %v238
    %v678 = vpop.f32.mrb[0].mxu0
    %v679 = vadd.f32 %v630, %v678
    %v680 = vpop.f32.mrb[0].mxu0
    %v681 = vpop.f32.mrb[0].mxu0
    %v682 = vadd.f32 %v633, %v681
    %v683 = vpop.f32.mrb[0].mxu0
    %684 = vmatprep.mubr.bf16.mxu0 %v245
    %685 = vmatmul.mubr.bf16.gmra.mrb[0].mxu0 %v244
    %v686 = vpop.f32.mrb[0].mxu0
    %v687 = vadd.f32 %v638, %v686
    %v688 = vpop.f32.mrb[0].mxu0
    %v689 = vpop.f32.mrb[0].mxu0
    %v690 = vadd.f32 %v641, %v689
    %v691 = vpop.f32.mrb[0].mxu0
    %692 = vdwg.mxu0
    %v693 = vmax.f32 %v679, 0.0
    %v694 = vmax.f32 %v682, 0.0
    %v695 = vmax.f32 %v687, 0.0
    %v696 = vmax.f32 %v690, 0.0
    %v697 = vld [vmem:[#allocation7] sm:$0xf]
    %v698 = vld [vmem:[#allocation7 + $0x4] sm:$0xf]
    %v699 = vld [vmem:[#allocation7 + $0x8] sm:$0xf]
    %v700 = vld [vmem:[#allocation7 + $0xc] sm:$0xf]
    %v701 = vld [vmem:[#allocation7 + $0x10] sm:$0xf]
    %v702 = vld [vmem:[#allocation7 + $0x14] sm:$0xf]
    %v703 = vld [vmem:[#allocation7 + $0x18] sm:$0xf]
    %v704 = vld [vmem:[#allocation7 + $0x1c] sm:$0xf]
    %v705 = vld [vmem:[#allocation7 + $0x20] sm:$0xf]
    %v706 = vld [vmem:[#allocation7 + $0x24] sm:$0xf]
    %v707 = vld [vmem:[#allocation7 + $0x28] sm:$0xf]
    %v708 = vld [vmem:[#allocation7 + $0x2c] sm:$0xf]
    %v709 = vld [vmem:[#allocation7 + $0x30] sm:$0xf]
    %v710 = vld [vmem:[#allocation7 + $0x34] sm:$0xf]
    %v711 = vld [vmem:[#allocation7 + $0x38] sm:$0xf]
    %v712 = vld [vmem:[#allocation7 + $0x3c] sm:$0xf]
    %v713 = vld [vmem:[%s4] sm:$0x7]
    %v714 = vpack.c.bf16 %v694, %v693
    %v715 = vpack.c.bf16 %v696, %v695
    %v716 = vlaneseq
    %v717 = vshrl.u32 %v716, 7
    %v718 = vsub.s32 0, %v717
    %v719 = vrot.slane %v713, %v718
    %v736 = vunpack.c.l.b16 %v697
    %v737 = vunpack.c.l.b16 %v698
    %v738 = vunpack.c.l.b16 %v699
    %v739 = vunpack.c.l.b16 %v700
    %v740 = vunpack.c.l.b16 %v701
    %v741 = vunpack.c.l.b16 %v702
    %v742 = vunpack.c.l.b16 %v703
    %v743 = vunpack.c.l.b16 %v704
    %v744 = vunpack.c.l.b16 %v705
    %v745 = vunpack.c.l.b16 %v706
    %v746 = vunpack.c.l.b16 %v707
    %v747 = vunpack.c.l.b16 %v708
    %v748 = vunpack.c.l.b16 %v709
    %v749 = vunpack.c.l.b16 %v710
    %v750 = vunpack.c.l.b16 %v711
    %v751 = vunpack.c.l.b16 %v712
    %v752 = vpack.c.b16 %v737, %v736
    %v753 = vpack.c.b16 %v739, %v738
    %v754 = vpack.c.b16 %v741, %v740
    %v755 = vpack.c.b16 %v743, %v742
    %v756 = vpack.c.b16 %v745, %v744
    %v757 = vpack.c.b16 %v747, %v746
    %v758 = vpack.c.b16 %v749, %v748
    %v759 = vpack.c.b16 %v751, %v750
    %768 = vmatprep.subr.bf16.mxu0 0
    %769 = vmatpush1.bf16.msra.mxu0 %v752
    %770 = vmatprep.subr.bf16.mxu0 0
    %771 = vmatpush1.bf16.msra.mxu0 %v753
    %772 = vmatprep.subr.bf16.mxu0 0
    %773 = vmatpush1.bf16.msra.mxu0 %v754
    %774 = vmatprep.subr.bf16.mxu0 0
    %775 = vmatpush1.bf16.msra.mxu0 %v755
    %776 = vmatprep.subr.bf16.mxu0 0
    %777 = vmatpush1.bf16.msra.mxu0 %v756
    %778 = vmatprep.subr.bf16.mxu0 0
    %779 = vmatpush1.bf16.msra.mxu0 %v757
    %780 = vmatprep.subr.bf16.mxu0 0
    %781 = vmatpush1.bf16.msra.mxu0 %v758
    %782 = vmatprep.subr.bf16.mxu0 0
    %783 = vmatpush1.bf16.msra.mxu0 %v759
    %784 = vmatprep.subr.bf16.mxu0 0
    %785 = vmatpush1.bf16.msra.mxu0 0
    %786 = vmatprep.subr.bf16.mxu0 0
    %787 = vmatpush1.bf16.msra.mxu0 0
    %788 = vmatprep.subr.bf16.mxu0 0
    %789 = vmatpush1.bf16.msra.mxu0 0
    %790 = vmatprep.subr.bf16.mxu0 0
    %791 = vmatpush1.bf16.msra.mxu0 0
    %792 = vmatprep.subr.bf16.mxu0 0
    %793 = vmatpush1.bf16.msra.mxu0 0
    %794 = vmatprep.subr.bf16.mxu0 0
    %795 = vmatpush1.bf16.msra.mxu0 0
    %796 = vmatprep.subr.bf16.mxu0 0
    %797 = vmatpush1.bf16.msra.mxu0 0
    %798 = vmatprep.subr.bf16.mxu0 0
    %799 = vmatpush1.bf16.msra.mxu0 0
    %800 = vmatprep.mubr.bf16.mxu0 0
    %801 = vmatmul.mubr.bf16.gmra.mrb[0].mxu0 %v714
    %v802 = vpop.f32.mrb[0].mxu0
    %v803 = vadd.f32 %v719, %v802
    %v804 = vpop.f32.mrb[0].mxu0
    %v805 = vpop.f32.mrb[0].mxu0
    %v806 = vadd.f32 %v719, %v805
    %v807 = vpop.f32.mrb[0].mxu0
    %808 = vmatprep.mubr.bf16.mxu0 0
    %809 = vmatmul.mubr.bf16.gmra.mrb[0].mxu0 %v715
    %v810 = vpop.f32.mrb[0].mxu0
    %v811 = vadd.f32 %v719, %v810
    %v812 = vpop.f32.mrb[0].mxu0
    %v813 = vpop.f32.mrb[0].mxu0
    %v814 = vadd.f32 %v719, %v813
    %v815 = vpop.f32.mrb[0].mxu0
    %816 = vdwg.mxu0
    %817 = vadd.xlane.f32.xlu0 %v803
    %v818 = vpop.xlane.xlu0 %817
    %819 = vadd.xlane.f32.xlu0 %v806
    %v820 = vpop.xlane.xlu0 %819
    %821 = vadd.xlane.f32.xlu0 %v811
    %v822 = vpop.xlane.xlu0 %821
    %823 = vadd.xlane.f32.xlu0 %v814
    %v824 = vpop.xlane.xlu0 %823
    %v825 = vmul.f32 %v803, %v803
    %v826 = vmul.f32 %v806, %v806
    %v827 = vmul.f32 %v811, %v811
    %v828 = vmul.f32 %v814, %v814
    %829 = vadd.xlane.f32.xlu0 %v825
    %v830 = vpop.xlane.xlu0 %829
    %831 = vadd.xlane.f32.xlu0 %v826
    %v832 = vpop.xlane.xlu0 %831
    %833 = vadd.xlane.f32.xlu0 %v827
    %v834 = vpop.xlane.xlu0 %833
    %835 = vadd.xlane.f32.xlu0 %v828
    %v836 = vpop.xlane.xlu0 %835
    %v837 = vmul.f32 %v818, 0.0078125
    %v838 = vmul.f32 %v820, 0.0078125
    %v839 = vmul.f32 %v822, 0.0078125
    %v840 = vmul.f32 %v824, 0.0078125
    %v841 = vmul.f32 %v830, 0.0078125
    %v842 = vmul.f32 %v832, 0.0078125
    %v843 = vmul.f32 %v834, 0.0078125
    %v844 = vmul.f32 %v836, 0.0078125
    %v845 = vmul.f32 %v837, %v837
    %v846 = vmul.f32 %v838, %v838
    %v847 = vmul.f32 %v839, %v839
    %v848 = vmul.f32 %v840, %v840
    %v849 = vsub.f32 %v841, %v845
    %v850 = vsub.f32 %v842, %v846
    %v851 = vsub.f32 %v843, %v847
    %v852 = vsub.f32 %v844, %v848
    %v853 = vadd.f32 %v849, 1e-05
    %v854 = vadd.f32 %v850, 1e-05
    %v855 = vadd.f32 %v851, 1e-05
    %v856 = vadd.f32 %v852, 1e-05
    %v857 = vrsqrt.pop %v853
    %v858 = vrsqrt.pop %v854
    %v859 = vrsqrt.pop %v855
    %v860 = vrsqrt.pop %v856
    %v861 = vlaneseq
    %v862 = vshrl.u32 %v861, 7
    %v863 = vsub.s32 1, %v862
    %v864 = vrot.slane %v713, %v863
    %v865 = vmul.f32 %v864, %v857
    %v866 = vmul.f32 %v864, %v858
    %v867 = vmul.f32 %v864, %v859
    %v868 = vmul.f32 %v864, %v860
    %v869 = vsub.f32 %v803, %v837
    %v870 = vsub.f32 %v806, %v838
    %v871 = vsub.f32 %v811, %v839
    %v872 = vsub.f32 %v814, %v840
    %v873 = vmul.f32 %v869, %v865
    %v874 = vmul.f32 %v870, %v866
    %v875 = vmul.f32 %v871, %v867
    %v876 = vmul.f32 %v872, %v868
    %v877 = vlaneseq
    %v878 = vshrl.u32 %v877, 7
    %v879 = vsub.s32 2, %v878
    %v880 = vrot.slane %v713, %v879
    %v881 = vadd.f32 %v873, %v880
    %v882 = vadd.f32 %v874, %v880
    %v883 = vadd.f32 %v875, %v880
    %v884 = vadd.f32 %v876, %v880
    %v885 = vmax.f32 %v881, 0.0
    %v886 = vmax.f32 %v882, 0.0
    %v887 = vmax.f32 %v883, 0.0
    %v888 = vmax.f32 %v884, 0.0
    %s889 = scalar_lea.vmem [#allocation7], 64
    %v890 = vld [vmem:[%s889] sm:$0xf]
    %v891 = vld [vmem:[%s889 + $0x4] sm:$0xf]
    %v892 = vld [vmem:[%s889 + $0x8] sm:$0xf]
    %v893 = vld [vmem:[%s889 + $0xc] sm:$0xf]
    %v894 = vld [vmem:[%s889 + $0x10] sm:$0xf]
    %v895 = vld [vmem:[%s889 + $0x14] sm:$0xf]
    %v896 = vld [vmem:[%s889 + $0x18] sm:$0xf]
    %v897 = vld [vmem:[%s889 + $0x1c] sm:$0xf]
    %v898 = vld [vmem:[%s889 + $0x20] sm:$0xf]
    %v899 = vld [vmem:[%s889 + $0x24] sm:$0xf]
    %v900 = vld [vmem:[%s889 + $0x28] sm:$0xf]
    %v901 = vld [vmem:[%s889 + $0x2c] sm:$0xf]
    %v902 = vld [vmem:[%s889 + $0x30] sm:$0xf]
    %v903 = vld [vmem:[%s889 + $0x34] sm:$0xf]
    %v904 = vld [vmem:[%s889 + $0x38] sm:$0xf]
    %v905 = vld [vmem:[%s889 + $0x3c] sm:$0xf]
    %s906 = scalar_lea.vmem %s4, 4
    %v907 = vld [vmem:[%s906] sm:$0x7]
    %v908 = vpack.c.bf16 %v886, %v885
    %v909 = vpack.c.bf16 %v888, %v887
    %v910 = vlaneseq
    %v911 = vshrl.u32 %v910, 7
    %v912 = vsub.s32 0, %v911
    %v913 = vrot.slane %v907, %v912
    %v930 = vunpack.c.l.b16 %v890
    %v931 = vunpack.c.l.b16 %v891
    %v932 = vunpack.c.l.b16 %v892
    %v933 = vunpack.c.l.b16 %v893
    %v934 = vunpack.c.l.b16 %v894
    %v935 = vunpack.c.l.b16 %v895
    %v936 = vunpack.c.l.b16 %v896
    %v937 = vunpack.c.l.b16 %v897
    %v938 = vunpack.c.l.b16 %v898
    %v939 = vunpack.c.l.b16 %v899
    %v940 = vunpack.c.l.b16 %v900
    %v941 = vunpack.c.l.b16 %v901
    %v942 = vunpack.c.l.b16 %v902
    %v943 = vunpack.c.l.b16 %v903
    %v944 = vunpack.c.l.b16 %v904
    %v945 = vunpack.c.l.b16 %v905
    %v946 = vpack.c.b16 %v931, %v930
    %v947 = vpack.c.b16 %v933, %v932
    %v948 = vpack.c.b16 %v935, %v934
    %v949 = vpack.c.b16 %v937, %v936
    %v950 = vpack.c.b16 %v939, %v938
    %v951 = vpack.c.b16 %v941, %v940
    %v952 = vpack.c.b16 %v943, %v942
    %v953 = vpack.c.b16 %v945, %v944
    %962 = vmatprep.subr.bf16.mxu0 0
    %963 = vmatpush1.bf16.msra.mxu0 %v946
    %964 = vmatprep.subr.bf16.mxu0 0
    %965 = vmatpush1.bf16.msra.mxu0 %v947
    %966 = vmatprep.subr.bf16.mxu0 0
    %967 = vmatpush1.bf16.msra.mxu0 %v948
    %968 = vmatprep.subr.bf16.mxu0 0
    %969 = vmatpush1.bf16.msra.mxu0 %v949
    %970 = vmatprep.subr.bf16.mxu0 0
    %971 = vmatpush1.bf16.msra.mxu0 %v950
    %972 = vmatprep.subr.bf16.mxu0 0
    %973 = vmatpush1.bf16.msra.mxu0 %v951
    %974 = vmatprep.subr.bf16.mxu0 0
    %975 = vmatpush1.bf16.msra.mxu0 %v952
    %976 = vmatprep.subr.bf16.mxu0 0
    %977 = vmatpush1.bf16.msra.mxu0 %v953
    %978 = vmatprep.subr.bf16.mxu0 0
    %979 = vmatpush1.bf16.msra.mxu0 0
    %980 = vmatprep.subr.bf16.mxu0 0
    %981 = vmatpush1.bf16.msra.mxu0 0
    %982 = vmatprep.subr.bf16.mxu0 0
    %983 = vmatpush1.bf16.msra.mxu0 0
    %984 = vmatprep.subr.bf16.mxu0 0
    %985 = vmatpush1.bf16.msra.mxu0 0
    %986 = vmatprep.subr.bf16.mxu0 0
    %987 = vmatpush1.bf16.msra.mxu0 0
    %988 = vmatprep.subr.bf16.mxu0 0
    %989 = vmatpush1.bf16.msra.mxu0 0
    %990 = vmatprep.subr.bf16.mxu0 0
    %991 = vmatpush1.bf16.msra.mxu0 0
    %992 = vmatprep.subr.bf16.mxu0 0
    %993 = vmatpush1.bf16.msra.mxu0 0
    %994 = vmatprep.mubr.bf16.mxu0 0
    %995 = vmatmul.mubr.bf16.gmra.mrb[0].mxu0 %v908
    %v996 = vpop.f32.mrb[0].mxu0
    %v997 = vadd.f32 %v913, %v996
    %v998 = vpop.f32.mrb[0].mxu0
    %v999 = vpop.f32.mrb[0].mxu0
    %v1000 = vadd.f32 %v913, %v999
    %v1001 = vpop.f32.mrb[0].mxu0
    %1002 = vmatprep.mubr.bf16.mxu0 0
    %1003 = vmatmul.mubr.bf16.gmra.mrb[0].mxu0 %v909
    %v1004 = vpop.f32.mrb[0].mxu0
    %v1005 = vadd.f32 %v913, %v1004
    %v1006 = vpop.f32.mrb[0].mxu0
    %v1007 = vpop.f32.mrb[0].mxu0
    %v1008 = vadd.f32 %v913, %v1007
    %v1009 = vpop.f32.mrb[0].mxu0
    %1010 = vdwg.mxu0
    %1011 = vadd.xlane.f32.xlu0 %v997
    %v1012 = vpop.xlane.xlu0 %1011
    %1013 = vadd.xlane.f32.xlu0 %v1000
    %v1014 = vpop.xlane.xlu0 %1013
    %1015 = vadd.xlane.f32.xlu0 %v1005
    %v1016 = vpop.xlane.xlu0 %1015
    %1017 = vadd.xlane.f32.xlu0 %v1008
    %v1018 = vpop.xlane.xlu0 %1017
    %v1019 = vmul.f32 %v997, %v997
    %v1020 = vmul.f32 %v1000, %v1000
    %v1021 = vmul.f32 %v1005, %v1005
    %v1022 = vmul.f32 %v1008, %v1008
    %1023 = vadd.xlane.f32.xlu0 %v1019
    %v1024 = vpop.xlane.xlu0 %1023
    %1025 = vadd.xlane.f32.xlu0 %v1020
    %v1026 = vpop.xlane.xlu0 %1025
    %1027 = vadd.xlane.f32.xlu0 %v1021
    %v1028 = vpop.xlane.xlu0 %1027
    %1029 = vadd.xlane.f32.xlu0 %v1022
    %v1030 = vpop.xlane.xlu0 %1029
    %v1031 = vmul.f32 %v1012, 0.0078125
    %v1032 = vmul.f32 %v1014, 0.0078125
    %v1033 = vmul.f32 %v1016, 0.0078125
    %v1034 = vmul.f32 %v1018, 0.0078125
    %v1035 = vmul.f32 %v1024, 0.0078125
    %v1036 = vmul.f32 %v1026, 0.0078125
    %v1037 = vmul.f32 %v1028, 0.0078125
    %v1038 = vmul.f32 %v1030, 0.0078125
    %v1039 = vmul.f32 %v1031, %v1031
    %v1040 = vmul.f32 %v1032, %v1032
    %v1041 = vmul.f32 %v1033, %v1033
    %v1042 = vmul.f32 %v1034, %v1034
    %v1043 = vsub.f32 %v1035, %v1039
    %v1044 = vsub.f32 %v1036, %v1040
    %v1045 = vsub.f32 %v1037, %v1041
    %v1046 = vsub.f32 %v1038, %v1042
    %v1047 = vadd.f32 %v1043, 1e-05
    %v1048 = vadd.f32 %v1044, 1e-05
    %v1049 = vadd.f32 %v1045, 1e-05
    %v1050 = vadd.f32 %v1046, 1e-05
    %v1051 = vrsqrt.pop %v1047
    %v1052 = vrsqrt.pop %v1048
    %v1053 = vrsqrt.pop %v1049
    %v1054 = vrsqrt.pop %v1050
    %v1055 = vlaneseq
    %v1056 = vshrl.u32 %v1055, 7
    %v1057 = vsub.s32 1, %v1056
    %v1058 = vrot.slane %v907, %v1057
    %v1059 = vmul.f32 %v1058, %v1051
    %v1060 = vmul.f32 %v1058, %v1052
    %v1061 = vmul.f32 %v1058, %v1053
    %v1062 = vmul.f32 %v1058, %v1054
    %v1063 = vsub.f32 %v997, %v1031
    %v1064 = vsub.f32 %v1000, %v1032
    %v1065 = vsub.f32 %v1005, %v1033
    %v1066 = vsub.f32 %v1008, %v1034
    %v1067 = vmul.f32 %v1063, %v1059
    %v1068 = vmul.f32 %v1064, %v1060
    %v1069 = vmul.f32 %v1065, %v1061
    %v1070 = vmul.f32 %v1066, %v1062
    %v1071 = vlaneseq
    %v1072 = vshrl.u32 %v1071, 7
    %v1073 = vsub.s32 2, %v1072
    %v1074 = vrot.slane %v907, %v1073
    %v1075 = vadd.f32 %v1067, %v1074
    %v1076 = vadd.f32 %v1068, %v1074
    %v1077 = vadd.f32 %v1069, %v1074
    %v1078 = vadd.f32 %v1070, %v1074
    %v1079 = vmax.f32 %v1075, 0.0
    %v1080 = vmax.f32 %v1076, 0.0
    %v1081 = vmax.f32 %v1077, 0.0
    %v1082 = vmax.f32 %v1078, 0.0
    %s1083 = scalar_lea.vmem [#allocation7], 128
    %v1084 = vld [vmem:[%s1083] sm:$0xf]
    %v1085 = vld [vmem:[%s1083 + $0x4] sm:$0xf]
    %v1086 = vld [vmem:[%s1083 + $0x8] sm:$0xf]
    %v1087 = vld [vmem:[%s1083 + $0xc] sm:$0xf]
    %v1088 = vld [vmem:[%s1083 + $0x10] sm:$0xf]
    %v1089 = vld [vmem:[%s1083 + $0x14] sm:$0xf]
    %v1090 = vld [vmem:[%s1083 + $0x18] sm:$0xf]
    %v1091 = vld [vmem:[%s1083 + $0x1c] sm:$0xf]
    %v1092 = vld [vmem:[%s1083 + $0x20] sm:$0xf]
    %v1093 = vld [vmem:[%s1083 + $0x24] sm:$0xf]
    %v1094 = vld [vmem:[%s1083 + $0x28] sm:$0xf]
    %v1095 = vld [vmem:[%s1083 + $0x2c] sm:$0xf]
    %v1096 = vld [vmem:[%s1083 + $0x30] sm:$0xf]
    %v1097 = vld [vmem:[%s1083 + $0x34] sm:$0xf]
    %v1098 = vld [vmem:[%s1083 + $0x38] sm:$0xf]
    %v1099 = vld [vmem:[%s1083 + $0x3c] sm:$0xf]
    %s1100 = scalar_lea.vmem %s4, 8
    %v1101 = vld [vmem:[%s1100] sm:$0x7]
    %v1102 = vpack.c.bf16 %v1080, %v1079
    %v1103 = vpack.c.bf16 %v1082, %v1081
    %v1104 = vlaneseq
    %v1105 = vshrl.u32 %v1104, 7
    %v1106 = vsub.s32 0, %v1105
    %v1107 = vrot.slane %v1101, %v1106
    %v1124 = vunpack.c.l.b16 %v1084
    %v1125 = vunpack.c.l.b16 %v1085
    %v1126 = vunpack.c.l.b16 %v1086
    %v1127 = vunpack.c.l.b16 %v1087
    %v1128 = vunpack.c.l.b16 %v1088
    %v1129 = vunpack.c.l.b16 %v1089
    %v1130 = vunpack.c.l.b16 %v1090
    %v1131 = vunpack.c.l.b16 %v1091
    %v1132 = vunpack.c.l.b16 %v1092
    %v1133 = vunpack.c.l.b16 %v1093
    %v1134 = vunpack.c.l.b16 %v1094
    %v1135 = vunpack.c.l.b16 %v1095
    %v1136 = vunpack.c.l.b16 %v1096
    %v1137 = vunpack.c.l.b16 %v1097
    %v1138 = vunpack.c.l.b16 %v1098
    %v1139 = vunpack.c.l.b16 %v1099
    %v1140 = vpack.c.b16 %v1125, %v1124
    %v1141 = vpack.c.b16 %v1127, %v1126
    %v1142 = vpack.c.b16 %v1129, %v1128
    %v1143 = vpack.c.b16 %v1131, %v1130
    %v1144 = vpack.c.b16 %v1133, %v1132
    %v1145 = vpack.c.b16 %v1135, %v1134
    %v1146 = vpack.c.b16 %v1137, %v1136
    %v1147 = vpack.c.b16 %v1139, %v1138
    %1156 = vmatprep.subr.bf16.mxu0 0
    %1157 = vmatpush1.bf16.msra.mxu0 %v1140
    %1158 = vmatprep.subr.bf16.mxu0 0
    %1159 = vmatpush1.bf16.msra.mxu0 %v1141
    %1160 = vmatprep.subr.bf16.mxu0 0
    %1161 = vmatpush1.bf16.msra.mxu0 %v1142
    %1162 = vmatprep.subr.bf16.mxu0 0
    %1163 = vmatpush1.bf16.msra.mxu0 %v1143
    %1164 = vmatprep.subr.bf16.mxu0 0
    %1165 = vmatpush1.bf16.msra.mxu0 %v1144
    %1166 = vmatprep.subr.bf16.mxu0 0
    %1167 = vmatpush1.bf16.msra.mxu0 %v1145
    %1168 = vmatprep.subr.bf16.mxu0 0
    %1169 = vmatpush1.bf16.msra.mxu0 %v1146
    %1170 = vmatprep.subr.bf16.mxu0 0
    %1171 = vmatpush1.bf16.msra.mxu0 %v1147
    %1172 = vmatprep.subr.bf16.mxu0 0
    %1173 = vmatpush1.bf16.msra.mxu0 0
    %1174 = vmatprep.subr.bf16.mxu0 0
    %1175 = vmatpush1.bf16.msra.mxu0 0
    %1176 = vmatprep.subr.bf16.mxu0 0
    %1177 = vmatpush1.bf16.msra.mxu0 0
    %1178 = vmatprep.subr.bf16.mxu0 0
    %1179 = vmatpush1.bf16.msra.mxu0 0
    %1180 = vmatprep.subr.bf16.mxu0 0
    %1181 = vmatpush1.bf16.msra.mxu0 0
    %1182 = vmatprep.subr.bf16.mxu0 0
    %1183 = vmatpush1.bf16.msra.mxu0 0
    %1184 = vmatprep.subr.bf16.mxu0 0
    %1185 = vmatpush1.bf16.msra.mxu0 0
    %1186 = vmatprep.subr.bf16.mxu0 0
    %1187 = vmatpush1.bf16.msra.mxu0 0
    %1188 = vmatprep.mubr.bf16.mxu0 0
    %1189 = vmatmul.mubr.bf16.gmra.mrb[0].mxu0 %v1102
    %v1190 = vpop.f32.mrb[0].mxu0
    %v1191 = vadd.f32 %v1107, %v1190
    %v1192 = vpop.f32.mrb[0].mxu0
    %v1193 = vpop.f32.mrb[0].mxu0
    %v1194 = vadd.f32 %v1107, %v1193
    %v1195 = vpop.f32.mrb[0].mxu0
    %1196 = vmatprep.mubr.bf16.mxu0 0
    %1197 = vmatmul.mubr.bf16.gmra.mrb[0].mxu0 %v1103
    %v1198 = vpop.f32.mrb[0].mxu0
    %v1199 = vadd.f32 %v1107, %v1198
    %v1200 = vpop.f32.mrb[0].mxu0
    %v1201 = vpop.f32.mrb[0].mxu0
    %v1202 = vadd.f32 %v1107, %v1201
    %v1203 = vpop.f32.mrb[0].mxu0
    %1204 = vdwg.mxu0
    %1205 = vadd.xlane.f32.xlu0 %v1191
    %v1206 = vpop.xlane.xlu0 %1205
    %1207 = vadd.xlane.f32.xlu0 %v1194
    %v1208 = vpop.xlane.xlu0 %1207
    %1209 = vadd.xlane.f32.xlu0 %v1199
    %v1210 = vpop.xlane.xlu0 %1209
    %1211 = vadd.xlane.f32.xlu0 %v1202
    %v1212 = vpop.xlane.xlu0 %1211
    %v1213 = vmul.f32 %v1191, %v1191
    %v1214 = vmul.f32 %v1194, %v1194
    %v1215 = vmul.f32 %v1199, %v1199
    %v1216 = vmul.f32 %v1202, %v1202
    %1217 = vadd.xlane.f32.xlu0 %v1213
    %v1218 = vpop.xlane.xlu0 %1217
    %1219 = vadd.xlane.f32.xlu0 %v1214
    %v1220 = vpop.xlane.xlu0 %1219
    %1221 = vadd.xlane.f32.xlu0 %v1215
    %v1222 = vpop.xlane.xlu0 %1221
    %1223 = vadd.xlane.f32.xlu0 %v1216
    %v1224 = vpop.xlane.xlu0 %1223
    %v1225 = vmul.f32 %v1206, 0.0078125
    %v1226 = vmul.f32 %v1208, 0.0078125
    %v1227 = vmul.f32 %v1210, 0.0078125
    %v1228 = vmul.f32 %v1212, 0.0078125
    %v1229 = vmul.f32 %v1218, 0.0078125
    %v1230 = vmul.f32 %v1220, 0.0078125
    %v1231 = vmul.f32 %v1222, 0.0078125
    %v1232 = vmul.f32 %v1224, 0.0078125
    %v1233 = vmul.f32 %v1225, %v1225
    %v1234 = vmul.f32 %v1226, %v1226
    %v1235 = vmul.f32 %v1227, %v1227
    %v1236 = vmul.f32 %v1228, %v1228
    %v1237 = vsub.f32 %v1229, %v1233
    %v1238 = vsub.f32 %v1230, %v1234
    %v1239 = vsub.f32 %v1231, %v1235
    %v1240 = vsub.f32 %v1232, %v1236
    %v1241 = vadd.f32 %v1237, 1e-05
    %v1242 = vadd.f32 %v1238, 1e-05
    %v1243 = vadd.f32 %v1239, 1e-05
    %v1244 = vadd.f32 %v1240, 1e-05
    %v1245 = vrsqrt.pop %v1241
    %v1246 = vrsqrt.pop %v1242
    %v1247 = vrsqrt.pop %v1243
    %v1248 = vrsqrt.pop %v1244
    %v1249 = vlaneseq
    %v1250 = vshrl.u32 %v1249, 7
    %v1251 = vsub.s32 1, %v1250
    %v1252 = vrot.slane %v1101, %v1251
    %v1253 = vmul.f32 %v1252, %v1245
    %v1254 = vmul.f32 %v1252, %v1246
    %v1255 = vmul.f32 %v1252, %v1247
    %v1256 = vmul.f32 %v1252, %v1248
    %v1257 = vsub.f32 %v1191, %v1225
    %v1258 = vsub.f32 %v1194, %v1226
    %v1259 = vsub.f32 %v1199, %v1227
    %v1260 = vsub.f32 %v1202, %v1228
    %v1261 = vmul.f32 %v1257, %v1253
    %v1262 = vmul.f32 %v1258, %v1254
    %v1263 = vmul.f32 %v1259, %v1255
    %v1264 = vmul.f32 %v1260, %v1256
    %v1265 = vlaneseq
    %v1266 = vshrl.u32 %v1265, 7
    %v1267 = vsub.s32 2, %v1266
    %v1268 = vrot.slane %v1101, %v1267
    %v1269 = vadd.f32 %v1261, %v1268
    %v1270 = vadd.f32 %v1262, %v1268
    %v1271 = vadd.f32 %v1263, %v1268
    %v1272 = vadd.f32 %v1264, %v1268
    %v1273 = vmax.f32 %v1269, 0.0
    %v1274 = vmax.f32 %v1270, 0.0
    %v1275 = vmax.f32 %v1271, 0.0
    %v1276 = vmax.f32 %v1272, 0.0
    %v1277 = vpack.c.bf16 %v1274, %v1273
    %v1278 = vpack.c.bf16 %v1276, %v1275
    %v1279 = vld [vmem:[#allocation8] sm:$0xf]
    %v1280 = vld [vmem:[#allocation8 + $0x4] sm:$0xf]
    %v1281 = vld [vmem:[#allocation8 + $0x8] sm:$0xf]
    %v1282 = vld [vmem:[#allocation8 + $0xc] sm:$0xf]
    %v1283 = vld [vmem:[#allocation8 + $0x10] sm:$0xf]
    %v1284 = vld [vmem:[#allocation8 + $0x14] sm:$0xf]
    %v1285 = vld [vmem:[#allocation8 + $0x18] sm:$0xf]
    %v1286 = vld [vmem:[#allocation8 + $0x1c] sm:$0xf]
    %v1287 = vld [vmem:[#allocation8 + $0x20] sm:$0xf]
    %v1288 = vld [vmem:[#allocation8 + $0x24] sm:$0xf]
    %v1289 = vld [vmem:[#allocation8 + $0x28] sm:$0xf]
    %v1290 = vld [vmem:[#allocation8 + $0x2c] sm:$0xf]
    %v1291 = vld [vmem:[#allocation8 + $0x30] sm:$0xf]
    %v1292 = vld [vmem:[#allocation8 + $0x34] sm:$0xf]
    %v1293 = vld [vmem:[#allocation8 + $0x38] sm:$0xf]
    %v1294 = vld [vmem:[#allocation8 + $0x3c] sm:$0xf]
    %v1295 = vld [vmem:[%s6] sm:$0x1]
    %v1297 = vlaneseq
    %v1298 = vshrl.u32 %v1297, 7
    %v1299 = vsub.s32 0, %v1298
    %v1300 = vrot.slane %v1295, %v1299
    %v1318 = vunpack.c.l.b16 %v1279
    %v1319 = vunpack.c.l.b16 %v1280
    %v1320 = vunpack.c.l.b16 %v1281
    %v1321 = vunpack.c.l.b16 %v1282
    %v1322 = vunpack.c.l.b16 %v1283
    %v1323 = vunpack.c.l.b16 %v1284
    %v1324 = vunpack.c.l.b16 %v1285
    %v1325 = vunpack.c.l.b16 %v1286
    %v1326 = vunpack.c.l.b16 %v1287
    %v1327 = vunpack.c.l.b16 %v1288
    %v1328 = vunpack.c.l.b16 %v1289
    %v1329 = vunpack.c.l.b16 %v1290
    %v1330 = vunpack.c.l.b16 %v1291
    %v1331 = vunpack.c.l.b16 %v1292
    %v1332 = vunpack.c.l.b16 %v1293
    %v1333 = vunpack.c.l.b16 %v1294
    %v1334 = vpack.c.b16 %v1319, %v1318
    %v1335 = vpack.c.b16 %v1321, %v1320
    %v1336 = vpack.c.b16 %v1323, %v1322
    %v1337 = vpack.c.b16 %v1325, %v1324
    %v1338 = vpack.c.b16 %v1327, %v1326
    %v1339 = vpack.c.b16 %v1329, %v1328
    %v1340 = vpack.c.b16 %v1331, %v1330
    %v1341 = vpack.c.b16 %v1333, %v1332
    %1350 = vmatprep.subr.bf16.mxu0 0
    %1351 = vmatpush1.bf16.msra.mxu0 %v1334
    %1352 = vmatprep.subr.bf16.mxu0 0
    %1353 = vmatpush1.bf16.msra.mxu0 %v1335
    %1354 = vmatprep.subr.bf16.mxu0 0
    %1355 = vmatpush1.bf16.msra.mxu0 %v1336
    %1356 = vmatprep.subr.bf16.mxu0 0
    %1357 = vmatpush1.bf16.msra.mxu0 %v1337
    %1358 = vmatprep.subr.bf16.mxu0 0
    %1359 = vmatpush1.bf16.msra.mxu0 %v1338
    %1360 = vmatprep.subr.bf16.mxu0 0
    %1361 = vmatpush1.bf16.msra.mxu0 %v1339
    %1362 = vmatprep.subr.bf16.mxu0 0
    %1363 = vmatpush1.bf16.msra.mxu0 %v1340
    %1364 = vmatprep.subr.bf16.mxu0 0
    %1365 = vmatpush1.bf16.msra.mxu0 %v1341
    %1366 = vmatprep.subr.bf16.mxu0 0
    %1367 = vmatpush1.bf16.msra.mxu0 0
    %1368 = vmatprep.subr.bf16.mxu0 0
    %1369 = vmatpush1.bf16.msra.mxu0 0
    %1370 = vmatprep.subr.bf16.mxu0 0
    %1371 = vmatpush1.bf16.msra.mxu0 0
    %1372 = vmatprep.subr.bf16.mxu0 0
    %1373 = vmatpush1.bf16.msra.mxu0 0
    %1374 = vmatprep.subr.bf16.mxu0 0
    %1375 = vmatpush1.bf16.msra.mxu0 0
    %1376 = vmatprep.subr.bf16.mxu0 0
    %1377 = vmatpush1.bf16.msra.mxu0 0
    %1378 = vmatprep.subr.bf16.mxu0 0
    %1379 = vmatpush1.bf16.msra.mxu0 0
    %1380 = vmatprep.subr.bf16.mxu0 0
    %1381 = vmatpush1.bf16.msra.mxu0 0
    %1382 = vmatprep.mubr.bf16.mxu0 0
    %1383 = vmatmul.mubr.bf16.gmra.mrb[0].mxu0 %v1277
    %v1384 = vpop.f32.mrb[0].mxu0
    %v1385 = vadd.f32 %v1300, %v1384
    %v1386 = vpop.f32.mrb[0].mxu0
    %v1387 = vpop.f32.mrb[0].mxu0
    %v1388 = vadd.f32 %v1300, %v1387
    %v1389 = vpop.f32.mrb[0].mxu0
    %1390 = vmatprep.mubr.bf16.mxu0 0
    %1391 = vmatmul.mubr.bf16.gmra.mrb[0].mxu0 %v1278
    %v1392 = vpop.f32.mrb[0].mxu0
    %v1393 = vadd.f32 %v1300, %v1392
    %v1394 = vpop.f32.mrb[0].mxu0
    %v1395 = vpop.f32.mrb[0].mxu0
    %v1396 = vadd.f32 %v1300, %v1395
    %v1397 = vpop.f32.mrb[0].mxu0
    %1398 = vdwg.mxu0
    %1399 = vst [vmem:[#allocation10] sm:$0xff] %v1385
    %1400 = vst [vmem:[#allocation10 + $0x8] sm:$0xff] %v1388
    %1401 = vst [vmem:[#allocation10 + $0x10] sm:$0xff] %v1393
    %1402 = vst [vmem:[#allocation10 + $0x18] sm:$0xff] %v1396
    // Predicated region
    $region46: #{tpu_custom_call.1} parent=1 // pred_check
      _
    $region47: #{tpu_custom_call.1} parent=1 // pred_check_branch
      %1404 = sbr.rel (0) target = $region49
    $region48: #{tpu_custom_call.1} parent=1 // pred_region
      %s1406 = ssub.s32 512, 512
      %1407 = vsyncadd [#allocation4], %s1406
      %s1408 = sshll.u32 [#allocation10], 4
      %s1409 = int_to_ptr.vmem [resolvable:$true] %s1408
      %1414 = dma.vmem_to_hbm [thread:$0]  %s1409, 512, %s7, [#allocation4], 128, 128, 8
    $region49: #{tpu_custom_call.1} parent=1 // pred_fallthru
      _
    // Predicated region
    $region50: #{tpu_custom_call.1} parent=1 // pred_check
      _
    $region51: #{tpu_custom_call.1} parent=1 // pred_check_branch
      %1416 = sbr.rel (0) target = $region53
    $region52: #{tpu_custom_call.1} parent=1 // pred_region
      %1417 = dma.done [#allocation4], 512
    $region53: #{tpu_custom_call.1} parent=1 // pred_fallthru
      _
    %1418 = vsyncpa [#allocation3], 1
    %1419 = vsyncpa [#allocation6], 1
    %1420 = vsyncpa [#allocation9], 1
    %1421 = vsyncpa [#allocation4], 1

</llo_original>
